<compile_context>
chip_gen: v7x
topology: tpu7x:2x2x1
jax: 0.10.0
libtpu: 0.0.40
codegen_flags: <defaults>
</compile_context>

<pallas_src>
import functools

import jax
import jax.numpy as jnp
from jax import lax
from jax.experimental import pallas as pl
from jax.experimental.pallas import tpu as pltpu


def _layer_norm_channels(h, gamma, beta, eps=1e-5):
    """LayerNorm over the channel axis (axis 0) of a (C, N) activation slab."""
    mu = jnp.mean(h, axis=0, keepdims=True)
    var = jnp.mean((h - mu) ** 2, axis=0, keepdims=True)
    return (h - mu) * lax.rsqrt(var + eps) * gamma + beta


def _variance_adaptor_kernel(
    x_ref, mask_ref,                     # (B*T, H), (1, B*T)
    w1_ref, b1_ref, g1_ref, be1_ref,     # conv1d_1 + layer_norm_1  (channels-first)
    w2_ref, b2_ref, g2_ref, be2_ref,     # conv1d_2 + layer_norm_2
    wl_ref, bl_ref,                      # linear_layer: (F, 1), (1, 1)
    logd_ref, dur_ref, exp_ref,          # outputs: (1,B*T), (1,B*T), (B,MAX_LEN,H)
    *, B, T, K, d_control, max_len):
    f32 = jnp.float32
    N = B * T

    x = x_ref[...]                       # (N, H)  natural layout, reused by the expansion
    xt = x.T                             # (H, N)  channels on sublanes, time on lanes

    # within-sequence frame index of every column (lane axis)
    t_row = lax.broadcasted_iota(jnp.int32, (1, N), 1) % T

    def conv1d(inp_t, w_ref, pad):
        """Conv1d along time (lanes). inp_t: (C_in, N); w_ref: (K, C_out, C_in)."""
        c_out = w_ref.shape[1]
        out = jnp.zeros((c_out, N), f32)
        for k in range(K):               # static unrolled taps
            d = k - pad
            if d == 0:
                tap = inp_t
            else:
                # tap[:, r] = inp_t[:, r + d]; zero where r + d falls off the sequence
                tap = pltpu.roll(inp_t, shift=(-d) % N, axis=1)
                edge = (((t_row + d) >= 0) & ((t_row + d) < T)).astype(f32)
                tap = tap * edge
            out = out + jnp.dot(w_ref[k], tap, preferred_element_type=f32)
        return out

    # ---- conv1d_1 -> ReLU -> LayerNorm (dropout_1 identity at inference) ---------
    h = conv1d(xt, w1_ref, (K - 1) // 2) + b1_ref[...]
    h = jnp.maximum(h, 0.0)
    h = _layer_norm_channels(h, g1_ref[...], be1_ref[...])

    # ---- conv1d_2 (padding=1, as in the module) -> ReLU -> LayerNorm -------------
    # TODO(synk): same-length output for conv1d_2 assumes kernel_size == 3.
    h = conv1d(h, w2_ref, 1) + b2_ref[...]
    h = jnp.maximum(h, 0.0)
    h = _layer_norm_channels(h, g2_ref[...], be2_ref[...])

    # ---- linear_layer (F -> 1) as VPU multiply + sublane reduce -> lane-dense row -
    ld = jnp.sum(h * wl_ref[...], axis=0, keepdims=True) + bl_ref[...]     # (1, N)
    ld = jnp.where(mask_ref[...] > 0.5, 0.0, ld)                           # masked_fill
    logd_ref[...] = ld

    # ---- duration_rounded = clamp(round(exp(ld) - 1) * d_control, min=0) ---------
    dur = jnp.maximum(jnp.round(jnp.exp(ld) - 1.0) * d_control, 0.0)       # (1, N)
    dur_ref[...] = dur

    # ---- length regulator ---------------------------------------------------------
    # int() truncation; clamp so an overflowed exp() cannot poison the cumsum.
    dur_lr = jnp.minimum(jnp.floor(dur), float(max_len))                   # (1, N)

    # per-sequence inclusive cumsum along lanes: Hillis-Steele, log2(T) roll+add steps
    cum = dur_lr
    off = 1
    while off < T:
        rolled = pltpu.roll(cum, shift=off, axis=1)
        cum = cum + rolled * (t_row >= off).astype(f32)
        off *= 2
    start = cum - dur_lr

    # onehot built directly as (MAX_LEN, T): contraction on natural MXU axes.
    j_f = lax.broadcasted_iota(jnp.int32, (max_len, T), 0).astype(f32)
    for b in range(B):                   # B is small & static: per-sequence expansion
        lo, hi = b * T, (b + 1) * T
        onehot = ((j_f >= start[:, lo:hi]) & (j_f < cum[:, lo:hi])).astype(f32)
        exp_ref[b] = jnp.dot(onehot, x[lo:hi, :], preferred_element_type=f32)


def variance_adaptor_forward(x, src_lens, src_mask, params, *, max_len, d_control=1.0):
    """Prediction path of VarianceAdaptor.forward (duration_target=None)."""
    # TODO(synk): teacher-forcing path (duration_target is not None) is not wired here.
    B, T, H = x.shape
    N = B * T
    K = params["kernel_size"]

    x_flat = x.reshape(N, H).astype(jnp.float32)
    mask_row = src_mask.reshape(1, N).astype(jnp.float32)   # 1.0 on padded frames

    kernel = functools.partial(
        _variance_adaptor_kernel, B=B, T=T, K=K,
        d_control=float(d_control), max_len=max_len)

    out_shapes = (
        jax.ShapeDtypeStruct((1, N), jnp.float32),            # log-duration (lane-dense)
        jax.ShapeDtypeStruct((1, N), jnp.float32),            # duration_rounded
        jax.ShapeDtypeStruct((B, max_len, H), jnp.float32),   # expanded encoder output
    )

    # No grid: one invocation processes the whole batch (weights loaded once, no
    # per-step pipeline overhead).  On v7x one could reintroduce a size-2 "parallel"
    # axis (e.g. over MAX_LEN halves) to feed both TensorCores.
    logd_row, dur_row, expanded = pl.pallas_call(
        kernel,
        out_shape=out_shapes,
        in_specs=[pl.BlockSpec(memory_space=pltpu.MemorySpace.VMEM) for _ in range(12)],
        out_specs=tuple(pl.BlockSpec(memory_space=pltpu.MemorySpace.VMEM) for _ in range(3)),
    )(x_flat, mask_row,
      params["w1"], params["b1"], params["g1"], params["be1"],
      params["w2"], params["b2"], params["g2"], params["be2"],
      params["wl"], params["bl"])

    log_duration_prediction = logd_row.reshape(B, T)          # (B, T)
    duration_rounded = dur_row.reshape(B, T)                  # (B, T)

    # tgt_len / tgt_mask glue, clamped to max_len so they agree with the expansion.
    idx = jnp.arange(T)[None, :]
    dur_eff = jnp.minimum(jnp.floor(duration_rounded), float(max_len))
    dur_eff = jnp.where(idx < src_lens.astype(jnp.int32)[:, None], dur_eff, 0.0)
    tgt_len = jnp.minimum(jnp.sum(dur_eff, axis=1), float(max_len)).astype(jnp.int32)
    tgt_mask = jnp.arange(max_len)[None, :] >= tgt_len[:, None]

    return expanded, log_duration_prediction, duration_rounded, tgt_len, tgt_mask


def init_params(key, *, hidden=32, filter_size=32, kernel_size=3):
    ks = jax.random.split(key, 3)
    scale = 0.1
    return {
        "kernel_size": kernel_size,
        # conv1: torch Conv1d weight (F, H, K) stored channels-first as (K, F, H):
        #        w1[k] == torch_weight[:, :, k]
        "w1": scale * jax.random.normal(ks[0], (kernel_size, filter_size, hidden), jnp.float32),
        "b1": jnp.zeros((filter_size, 1), jnp.float32),
        "g1": jnp.ones((filter_size, 1), jnp.float32),
        "be1": jnp.zeros((filter_size, 1), jnp.float32),
        # conv2: (K, F, F)
        "w2": scale * jax.random.normal(ks[1], (kernel_size, filter_size, filter_size), jnp.float32),
        "b2": jnp.zeros((filter_size, 1), jnp.float32),
        "g2": jnp.ones((filter_size, 1), jnp.float32),
        "be2": jnp.zeros((filter_size, 1), jnp.float32),
        # linear: torch (1, F) weight stored as (F, 1) column; bias (1, 1)
        "wl": scale * jax.random.normal(ks[2], (filter_size, 1), jnp.float32),
        "bl": 0.5 * jnp.ones((1, 1), jnp.float32),
    }


if __name__ == "__main__":
    B, T, H = 2, 8, 32       # batch, src seq len, encoder_hidden
    F, K = 32, 3             # variance_predictor filter_size, kernel_size
    MAX_LEN = 48             # static target length (forward's max_len argument)

    key = jax.random.PRNGKey(0)
    k_x, k_p = jax.random.split(key)
    x = jax.random.normal(k_x, (B, T, H), jnp.float32)
    src_lens = jnp.array([8, 6], dtype=jnp.int32)
    src_mask = jnp.arange(T)[None, :] >= src_lens[:, None]    # True on padded positions

    params = init_params(k_p, hidden=H, filter_size=F, kernel_size=K)

    outs = variance_adaptor_forward(
        x, src_lens, src_mask, params, max_len=MAX_LEN, d_control=1.0)
    outs = jax.block_until_ready(outs)

    expanded, log_dur, dur_rounded, tgt_len, tgt_mask = outs
    assert expanded.shape == (B, MAX_LEN, H)
    assert log_dur.shape == (B, T)
    assert dur_rounded.shape == (B, T)
    assert tgt_len.shape == (B,)
    assert tgt_mask.shape == (B, MAX_LEN)
    assert bool(jnp.all(jnp.isfinite(expanded)))
    print("KERNEL_OK")
</pallas_src>

<mosaic_0001>
module attributes {stable_mosaic.version = 11 : i64} {
  func.func @_variance_adaptor_kernel(%arg0: memref<16x32xf32, #tpu.memory_space<vmem>>, %arg1: memref<1x16xf32, #tpu.memory_space<vmem>>, %arg2: memref<3x32x32xf32, #tpu.memory_space<vmem>>, %arg3: memref<32x1xf32, #tpu.memory_space<vmem>>, %arg4: memref<32x1xf32, #tpu.memory_space<vmem>>, %arg5: memref<32x1xf32, #tpu.memory_space<vmem>>, %arg6: memref<3x32x32xf32, #tpu.memory_space<vmem>>, %arg7: memref<32x1xf32, #tpu.memory_space<vmem>>, %arg8: memref<32x1xf32, #tpu.memory_space<vmem>>, %arg9: memref<32x1xf32, #tpu.memory_space<vmem>>, %arg10: memref<32x1xf32, #tpu.memory_space<vmem>>, %arg11: memref<1x1xf32, #tpu.memory_space<vmem>>, %arg12: memref<1x16xf32, #tpu.memory_space<vmem>>, %arg13: memref<1x16xf32, #tpu.memory_space<vmem>>, %arg14: memref<2x48x32xf32, #tpu.memory_space<vmem>>) attributes {dimension_semantics = [], scalar_prefetch = 0 : i64, scratch_operands = 0 : i64, tpu.core_type = #tpu.core_type<tc>} {
    %c0 = arith.constant 0 : index
    %c0_0 = arith.constant 0 : index
    %0 = vector.load %arg0[%c0, %c0_0] : memref<16x32xf32, #tpu.memory_space<vmem>>, vector<16x32xf32>
    %1 = tpu.transpose %0, [1, 0] : vector<16x32xf32> -> vector<32x16xf32>
    %2 = tpu.iota {dimensions = array<i32: 1>} : vector<1x16xi32>
    %c8_i32 = arith.constant 8 : i32
    %c0_i32 = arith.constant 0 : i32
    %3 = arith.cmpi eq, %c8_i32, %c0_i32 : i32
    %c1_i32 = arith.constant 1 : i32
    %4 = arith.select %3, %c1_i32, %c8_i32 : i32
    %5 = vector.broadcast %4 : i32 to vector<1x16xi32>
    %6 = arith.remsi %2, %5 : vector<1x16xi32>
    %c0_i32_1 = arith.constant 0 : i32
    %7 = vector.broadcast %c0_i32_1 : i32 to vector<1x16xi32>
    %8 = arith.cmpi ne, %6, %7 : vector<1x16xi32>
    %c0_i32_2 = arith.constant 0 : i32
    %9 = vector.broadcast %c0_i32_2 : i32 to vector<1x16xi32>
    %10 = arith.cmpi slt, %6, %9 : vector<1x16xi32>
    %c0_i32_3 = arith.constant 0 : i32
    %11 = arith.cmpi slt, %4, %c0_i32_3 : i32
    %12 = vector.broadcast %11 : i1 to vector<1x16xi1>
    %13 = vector.broadcast %12 : vector<1x16xi1> to vector<1x16xi1>
    %14 = arith.xori %10, %13 : vector<1x16xi1>
    %15 = arith.andi %14, %8 : vector<1x16xi1>
    %16 = vector.broadcast %4 : i32 to vector<1x16xi32>
    %17 = arith.addi %6, %16 : vector<1x16xi32>
    %18 = arith.select %15, %17, %6 : vector<1x16xi1>, vector<1x16xi32>
    %cst = arith.constant 0.000000e+00 : f32
    %19 = vector.broadcast %cst : f32 to vector<32x16xf32>
    %c1_i32_4 = arith.constant 1 : i32
    %20 = tpu.dynamic_rotate %1 by %c1_i32_4 dim 1 : vector<32x16xf32>, i32 -> vector<32x16xf32>
    %c-1_i32 = arith.constant -1 : i32
    %21 = vector.broadcast %c-1_i32 : i32 to vector<1x16xi32>
    %22 = arith.addi %18, %21 : vector<1x16xi32>
    %c0_i32_5 = arith.constant 0 : i32
    %23 = vector.broadcast %c0_i32_5 : i32 to vector<1x16xi32>
    %24 = arith.cmpi sge, %22, %23 : vector<1x16xi32>
    %c-1_i32_6 = arith.constant -1 : i32
    %25 = vector.broadcast %c-1_i32_6 : i32 to vector<1x16xi32>
    %26 = arith.addi %18, %25 : vector<1x16xi32>
    %c8_i32_7 = arith.constant 8 : i32
    %27 = vector.broadcast %c8_i32_7 : i32 to vector<1x16xi32>
    %28 = arith.cmpi slt, %26, %27 : vector<1x16xi32>
    %29 = arith.andi %24, %28 : vector<1x16xi1>
    %30 = arith.extui %29 : vector<1x16xi1> to vector<1x16xi32>
    %31 = arith.sitofp %30 : vector<1x16xi32> to vector<1x16xf32>
    %32 = vector.broadcast %31 : vector<1x16xf32> to vector<32x16xf32>
    %33 = arith.mulf %20, %32 : vector<32x16xf32>
    %c0_8 = arith.constant 0 : index
    %c0_9 = arith.constant 0 : index
    %c0_10 = arith.constant 0 : index
    %34 = vector.load %arg2[%c0_8, %c0_9, %c0_10] : memref<3x32x32xf32, #tpu.memory_space<vmem>>, vector<1x32x32xf32>
    %35 = vector.shape_cast %34 : vector<1x32x32xf32> to vector<32x32xf32>
    %cst_11 = arith.constant dense<0.000000e+00> : vector<32x16xf32>
    %36 = tpu.matmul %35, %33, %cst_11 {dimension_numbers = #tpu.dot_dimension_numbers<[1], [0], [0], [1], [0, 0, 1, 1], [], []>} : vector<32x32xf32>, vector<32x16xf32>, vector<32x16xf32> -> vector<32x16xf32>
    %37 = arith.addf %19, %36 : vector<32x16xf32>
    %c1 = arith.constant 1 : index
    %c0_12 = arith.constant 0 : index
    %c0_13 = arith.constant 0 : index
    %38 = vector.load %arg2[%c1, %c0_12, %c0_13] : memref<3x32x32xf32, #tpu.memory_space<vmem>>, vector<1x32x32xf32>
    %39 = vector.shape_cast %38 : vector<1x32x32xf32> to vector<32x32xf32>
    %cst_14 = arith.constant dense<0.000000e+00> : vector<32x16xf32>
    %40 = tpu.matmul %39, %1, %cst_14 {dimension_numbers = #tpu.dot_dimension_numbers<[1], [0], [0], [1], [0, 0, 1, 1], [], []>} : vector<32x32xf32>, vector<32x16xf32>, vector<32x16xf32> -> vector<32x16xf32>
    %41 = arith.addf %37, %40 : vector<32x16xf32>
    %c15_i32 = arith.constant 15 : i32
    %42 = tpu.dynamic_rotate %1 by %c15_i32 dim 1 : vector<32x16xf32>, i32 -> vector<32x16xf32>
    %c1_i32_15 = arith.constant 1 : i32
    %43 = vector.broadcast %c1_i32_15 : i32 to vector<1x16xi32>
    %44 = arith.addi %18, %43 : vector<1x16xi32>
    %c0_i32_16 = arith.constant 0 : i32
    %45 = vector.broadcast %c0_i32_16 : i32 to vector<1x16xi32>
    %46 = arith.cmpi sge, %44, %45 : vector<1x16xi32>
    %c1_i32_17 = arith.constant 1 : i32
    %47 = vector.broadcast %c1_i32_17 : i32 to vector<1x16xi32>
    %48 = arith.addi %18, %47 : vector<1x16xi32>
    %c8_i32_18 = arith.constant 8 : i32
    %49 = vector.broadcast %c8_i32_18 : i32 to vector<1x16xi32>
    %50 = arith.cmpi slt, %48, %49 : vector<1x16xi32>
    %51 = arith.andi %46, %50 : vector<1x16xi1>
    %52 = arith.extui %51 : vector<1x16xi1> to vector<1x16xi32>
    %53 = arith.sitofp %52 : vector<1x16xi32> to vector<1x16xf32>
    %54 = vector.broadcast %53 : vector<1x16xf32> to vector<32x16xf32>
    %55 = arith.mulf %42, %54 : vector<32x16xf32>
    %c2 = arith.constant 2 : index
    %c0_19 = arith.constant 0 : index
    %c0_20 = arith.constant 0 : index
    %56 = vector.load %arg2[%c2, %c0_19, %c0_20] : memref<3x32x32xf32, #tpu.memory_space<vmem>>, vector<1x32x32xf32>
    %57 = vector.shape_cast %56 : vector<1x32x32xf32> to vector<32x32xf32>
    %cst_21 = arith.constant dense<0.000000e+00> : vector<32x16xf32>
    %58 = tpu.matmul %57, %55, %cst_21 {dimension_numbers = #tpu.dot_dimension_numbers<[1], [0], [0], [1], [0, 0, 1, 1], [], []>} : vector<32x32xf32>, vector<32x16xf32>, vector<32x16xf32> -> vector<32x16xf32>
    %59 = arith.addf %41, %58 : vector<32x16xf32>
    %c0_22 = arith.constant 0 : index
    %c0_23 = arith.constant 0 : index
    %60 = vector.load %arg3[%c0_22, %c0_23] : memref<32x1xf32, #tpu.memory_space<vmem>>, vector<32x1xf32>
    %61 = vector.broadcast %60 : vector<32x1xf32> to vector<32x16xf32>
    %62 = arith.addf %59, %61 : vector<32x16xf32>
    %cst_24 = arith.constant 0.000000e+00 : f32
    %63 = vector.broadcast %cst_24 : f32 to vector<32x16xf32>
    %64 = arith.maximumf %62, %63 : vector<32x16xf32>
    %c0_25 = arith.constant 0 : index
    %c0_26 = arith.constant 0 : index
    %65 = vector.load %arg4[%c0_25, %c0_26] : memref<32x1xf32, #tpu.memory_space<vmem>>, vector<32x1xf32>
    %c0_27 = arith.constant 0 : index
    %c0_28 = arith.constant 0 : index
    %66 = vector.load %arg5[%c0_27, %c0_28] : memref<32x1xf32, #tpu.memory_space<vmem>>, vector<32x1xf32>
    %cst_29 = arith.constant dense<0.000000e+00> : vector<16xf32>
    %67 = vector.multi_reduction <add>, %64, %cst_29 [0] : vector<32x16xf32> to vector<16xf32>
    %68 = vector.shape_cast %67 : vector<16xf32> to vector<1x16xf32>
    %cst_30 = arith.constant 3.200000e+01 : f32
    %69 = vector.broadcast %cst_30 : f32 to vector<1x16xf32>
    %70 = arith.divf %68, %69 : vector<1x16xf32>
    %71 = vector.broadcast %70 : vector<1x16xf32> to vector<32x16xf32>
    %72 = arith.subf %64, %71 : vector<32x16xf32>
    %73 = arith.mulf %72, %72 : vector<32x16xf32>
    %cst_31 = arith.constant dense<0.000000e+00> : vector<16xf32>
    %74 = vector.multi_reduction <add>, %73, %cst_31 [0] : vector<32x16xf32> to vector<16xf32>
    %75 = vector.shape_cast %74 : vector<16xf32> to vector<1x16xf32>
    %cst_32 = arith.constant 3.200000e+01 : f32
    %76 = vector.broadcast %cst_32 : f32 to vector<1x16xf32>
    %77 = arith.divf %75, %76 : vector<1x16xf32>
    %78 = vector.broadcast %70 : vector<1x16xf32> to vector<32x16xf32>
    %79 = arith.subf %64, %78 : vector<32x16xf32>
    %cst_33 = arith.constant 9.99999974E-6 : f32
    %80 = vector.broadcast %cst_33 : f32 to vector<1x16xf32>
    %81 = arith.addf %77, %80 : vector<1x16xf32>
    %82 = math.rsqrt %81 : vector<1x16xf32>
    %83 = vector.broadcast %82 : vector<1x16xf32> to vector<32x16xf32>
    %84 = arith.mulf %79, %83 : vector<32x16xf32>
    %85 = vector.broadcast %65 : vector<32x1xf32> to vector<32x16xf32>
    %86 = arith.mulf %84, %85 : vector<32x16xf32>
    %87 = vector.broadcast %66 : vector<32x1xf32> to vector<32x16xf32>
    %88 = arith.addf %86, %87 : vector<32x16xf32>
    %cst_34 = arith.constant 0.000000e+00 : f32
    %89 = vector.broadcast %cst_34 : f32 to vector<32x16xf32>
    %c1_i32_35 = arith.constant 1 : i32
    %90 = tpu.dynamic_rotate %88 by %c1_i32_35 dim 1 : vector<32x16xf32>, i32 -> vector<32x16xf32>
    %c-1_i32_36 = arith.constant -1 : i32
    %91 = vector.broadcast %c-1_i32_36 : i32 to vector<1x16xi32>
    %92 = arith.addi %18, %91 : vector<1x16xi32>
    %c0_i32_37 = arith.constant 0 : i32
    %93 = vector.broadcast %c0_i32_37 : i32 to vector<1x16xi32>
    %94 = arith.cmpi sge, %92, %93 : vector<1x16xi32>
    %c-1_i32_38 = arith.constant -1 : i32
    %95 = vector.broadcast %c-1_i32_38 : i32 to vector<1x16xi32>
    %96 = arith.addi %18, %95 : vector<1x16xi32>
    %c8_i32_39 = arith.constant 8 : i32
    %97 = vector.broadcast %c8_i32_39 : i32 to vector<1x16xi32>
    %98 = arith.cmpi slt, %96, %97 : vector<1x16xi32>
    %99 = arith.andi %94, %98 : vector<1x16xi1>
    %100 = arith.extui %99 : vector<1x16xi1> to vector<1x16xi32>
    %101 = arith.sitofp %100 : vector<1x16xi32> to vector<1x16xf32>
    %102 = vector.broadcast %101 : vector<1x16xf32> to vector<32x16xf32>
    %103 = arith.mulf %90, %102 : vector<32x16xf32>
    %c0_40 = arith.constant 0 : index
    %c0_41 = arith.constant 0 : index
    %c0_42 = arith.constant 0 : index
    %104 = vector.load %arg6[%c0_40, %c0_41, %c0_42] : memref<3x32x32xf32, #tpu.memory_space<vmem>>, vector<1x32x32xf32>
    %105 = vector.shape_cast %104 : vector<1x32x32xf32> to vector<32x32xf32>
    %cst_43 = arith.constant dense<0.000000e+00> : vector<32x16xf32>
    %106 = tpu.matmul %105, %103, %cst_43 {dimension_numbers = #tpu.dot_dimension_numbers<[1], [0], [0], [1], [0, 0, 1, 1], [], []>} : vector<32x32xf32>, vector<32x16xf32>, vector<32x16xf32> -> vector<32x16xf32>
    %107 = arith.addf %89, %106 : vector<32x16xf32>
    %c1_44 = arith.constant 1 : index
    %c0_45 = arith.constant 0 : index
    %c0_46 = arith.constant 0 : index
    %108 = vector.load %arg6[%c1_44, %c0_45, %c0_46] : memref<3x32x32xf32, #tpu.memory_space<vmem>>, vector<1x32x32xf32>
    %109 = vector.shape_cast %108 : vector<1x32x32xf32> to vector<32x32xf32>
    %cst_47 = arith.constant dense<0.000000e+00> : vector<32x16xf32>
    %110 = tpu.matmul %109, %88, %cst_47 {dimension_numbers = #tpu.dot_dimension_numbers<[1], [0], [0], [1], [0, 0, 1, 1], [], []>} : vector<32x32xf32>, vector<32x16xf32>, vector<32x16xf32> -> vector<32x16xf32>
    %111 = arith.addf %107, %110 : vector<32x16xf32>
    %c15_i32_48 = arith.constant 15 : i32
    %112 = tpu.dynamic_rotate %88 by %c15_i32_48 dim 1 : vector<32x16xf32>, i32 -> vector<32x16xf32>
    %c1_i32_49 = arith.constant 1 : i32
    %113 = vector.broadcast %c1_i32_49 : i32 to vector<1x16xi32>
    %114 = arith.addi %18, %113 : vector<1x16xi32>
    %c0_i32_50 = arith.constant 0 : i32
    %115 = vector.broadcast %c0_i32_50 : i32 to vector<1x16xi32>
    %116 = arith.cmpi sge, %114, %115 : vector<1x16xi32>
    %c1_i32_51 = arith.constant 1 : i32
    %117 = vector.broadcast %c1_i32_51 : i32 to vector<1x16xi32>
    %118 = arith.addi %18, %117 : vector<1x16xi32>
    %c8_i32_52 = arith.constant 8 : i32
    %119 = vector.broadcast %c8_i32_52 : i32 to vector<1x16xi32>
    %120 = arith.cmpi slt, %118, %119 : vector<1x16xi32>
    %121 = arith.andi %116, %120 : vector<1x16xi1>
    %122 = arith.extui %121 : vector<1x16xi1> to vector<1x16xi32>
    %123 = arith.sitofp %122 : vector<1x16xi32> to vector<1x16xf32>
    %124 = vector.broadcast %123 : vector<1x16xf32> to vector<32x16xf32>
    %125 = arith.mulf %112, %124 : vector<32x16xf32>
    %c2_53 = arith.constant 2 : index
    %c0_54 = arith.constant 0 : index
    %c0_55 = arith.constant 0 : index
    %126 = vector.load %arg6[%c2_53, %c0_54, %c0_55] : memref<3x32x32xf32, #tpu.memory_space<vmem>>, vector<1x32x32xf32>
    %127 = vector.shape_cast %126 : vector<1x32x32xf32> to vector<32x32xf32>
    %cst_56 = arith.constant dense<0.000000e+00> : vector<32x16xf32>
    %128 = tpu.matmul %127, %125, %cst_56 {dimension_numbers = #tpu.dot_dimension_numbers<[1], [0], [0], [1], [0, 0, 1, 1], [], []>} : vector<32x32xf32>, vector<32x16xf32>, vector<32x16xf32> -> vector<32x16xf32>
    %129 = arith.addf %111, %128 : vector<32x16xf32>
    %c0_57 = arith.constant 0 : index
    %c0_58 = arith.constant 0 : index
    %130 = vector.load %arg7[%c0_57, %c0_58] : memref<32x1xf32, #tpu.memory_space<vmem>>, vector<32x1xf32>
    %131 = vector.broadcast %130 : vector<32x1xf32> to vector<32x16xf32>
    %132 = arith.addf %129, %131 : vector<32x16xf32>
    %cst_59 = arith.constant 0.000000e+00 : f32
    %133 = vector.broadcast %cst_59 : f32 to vector<32x16xf32>
    %134 = arith.maximumf %132, %133 : vector<32x16xf32>
    %c0_60 = arith.constant 0 : index
    %c0_61 = arith.constant 0 : index
    %135 = vector.load %arg8[%c0_60, %c0_61] : memref<32x1xf32, #tpu.memory_space<vmem>>, vector<32x1xf32>
    %c0_62 = arith.constant 0 : index
    %c0_63 = arith.constant 0 : index
    %136 = vector.load %arg9[%c0_62, %c0_63] : memref<32x1xf32, #tpu.memory_space<vmem>>, vector<32x1xf32>
    %cst_64 = arith.constant dense<0.000000e+00> : vector<16xf32>
    %137 = vector.multi_reduction <add>, %134, %cst_64 [0] : vector<32x16xf32> to vector<16xf32>
    %138 = vector.shape_cast %137 : vector<16xf32> to vector<1x16xf32>
    %cst_65 = arith.constant 3.200000e+01 : f32
    %139 = vector.broadcast %cst_65 : f32 to vector<1x16xf32>
    %140 = arith.divf %138, %139 : vector<1x16xf32>
    %141 = vector.broadcast %140 : vector<1x16xf32> to vector<32x16xf32>
    %142 = arith.subf %134, %141 : vector<32x16xf32>
    %143 = arith.mulf %142, %142 : vector<32x16xf32>
    %cst_66 = arith.constant dense<0.000000e+00> : vector<16xf32>
    %144 = vector.multi_reduction <add>, %143, %cst_66 [0] : vector<32x16xf32> to vector<16xf32>
    %145 = vector.shape_cast %144 : vector<16xf32> to vector<1x16xf32>
    %cst_67 = arith.constant 3.200000e+01 : f32
    %146 = vector.broadcast %cst_67 : f32 to vector<1x16xf32>
    %147 = arith.divf %145, %146 : vector<1x16xf32>
    %148 = vector.broadcast %140 : vector<1x16xf32> to vector<32x16xf32>
    %149 = arith.subf %134, %148 : vector<32x16xf32>
    %cst_68 = arith.constant 9.99999974E-6 : f32
    %150 = vector.broadcast %cst_68 : f32 to vector<1x16xf32>
    %151 = arith.addf %147, %150 : vector<1x16xf32>
    %152 = math.rsqrt %151 : vector<1x16xf32>
    %153 = vector.broadcast %152 : vector<1x16xf32> to vector<32x16xf32>
    %154 = arith.mulf %149, %153 : vector<32x16xf32>
    %155 = vector.broadcast %135 : vector<32x1xf32> to vector<32x16xf32>
    %156 = arith.mulf %154, %155 : vector<32x16xf32>
    %157 = vector.broadcast %136 : vector<32x1xf32> to vector<32x16xf32>
    %158 = arith.addf %156, %157 : vector<32x16xf32>
    %c0_69 = arith.constant 0 : index
    %c0_70 = arith.constant 0 : index
    %159 = vector.load %arg10[%c0_69, %c0_70] : memref<32x1xf32, #tpu.memory_space<vmem>>, vector<32x1xf32>
    %160 = vector.broadcast %159 : vector<32x1xf32> to vector<32x16xf32>
    %161 = arith.mulf %158, %160 : vector<32x16xf32>
    %cst_71 = arith.constant dense<0.000000e+00> : vector<16xf32>
    %162 = vector.multi_reduction <add>, %161, %cst_71 [0] : vector<32x16xf32> to vector<16xf32>
    %163 = vector.shape_cast %162 : vector<16xf32> to vector<1x16xf32>
    %c0_72 = arith.constant 0 : index
    %c0_73 = arith.constant 0 : index
    %164 = vector.load %arg11[%c0_72, %c0_73] : memref<1x1xf32, #tpu.memory_space<vmem>>, vector<1x1xf32>
    %165 = vector.broadcast %164 : vector<1x1xf32> to vector<1x16xf32>
    %166 = arith.addf %163, %165 : vector<1x16xf32>
    %c0_74 = arith.constant 0 : index
    %c0_75 = arith.constant 0 : index
    %167 = vector.load %arg1[%c0_74, %c0_75] : memref<1x16xf32, #tpu.memory_space<vmem>>, vector<1x16xf32>
    %cst_76 = arith.constant 5.000000e-01 : f32
    %168 = vector.broadcast %cst_76 : f32 to vector<1x16xf32>
    %169 = arith.cmpf ogt, %167, %168 : vector<1x16xf32>
    %cst_77 = arith.constant 0.000000e+00 : f32
    %170 = vector.broadcast %cst_77 : f32 to vector<1x16xf32>
    %171 = arith.select %169, %170, %166 : vector<1x16xi1>, vector<1x16xf32>
    %c0_78 = arith.constant 0 : index
    %c0_79 = arith.constant 0 : index
    %172 = vector.load %arg12[%c0_78, %c0_79] : memref<1x16xf32, #tpu.memory_space<vmem>>, vector<1x16xf32>
    tpu.vector_store %arg12[%c0_78, %c0_79], %171 {strides = array<i32>} : memref<1x16xf32, #tpu.memory_space<vmem>>, vector<1x16xf32>,
    %173 = math.exp %171 : vector<1x16xf32>
    %cst_80 = arith.constant 1.000000e+00 : f32
    %174 = vector.broadcast %cst_80 : f32 to vector<1x16xf32>
    %175 = arith.subf %173, %174 : vector<1x16xf32>
    %176 = math.roundeven %175 : vector<1x16xf32>
    %cst_81 = arith.constant 1.000000e+00 : f32
    %177 = vector.broadcast %cst_81 : f32 to vector<1x16xf32>
    %178 = arith.mulf %176, %177 : vector<1x16xf32>
    %cst_82 = arith.constant 0.000000e+00 : f32
    %179 = vector.broadcast %cst_82 : f32 to vector<1x16xf32>
    %180 = arith.maximumf %178, %179 : vector<1x16xf32>
    %c0_83 = arith.constant 0 : index
    %c0_84 = arith.constant 0 : index
    %181 = vector.load %arg13[%c0_83, %c0_84] : memref<1x16xf32, #tpu.memory_space<vmem>>, vector<1x16xf32>
    tpu.vector_store %arg13[%c0_83, %c0_84], %180 {strides = array<i32>} : memref<1x16xf32, #tpu.memory_space<vmem>>, vector<1x16xf32>,
    %182 = math.floor %180 : vector<1x16xf32>
    %cst_85 = arith.constant 4.800000e+01 : f32
    %183 = vector.broadcast %cst_85 : f32 to vector<1x16xf32>
    %184 = arith.minimumf %182, %183 : vector<1x16xf32>
    %c1_i32_86 = arith.constant 1 : i32
    %185 = tpu.dynamic_rotate %184 by %c1_i32_86 dim 1 : vector<1x16xf32>, i32 -> vector<1x16xf32>
    %c1_i32_87 = arith.constant 1 : i32
    %186 = vector.broadcast %c1_i32_87 : i32 to vector<1x16xi32>
    %187 = arith.cmpi sge, %18, %186 : vector<1x16xi32>
    %188 = arith.extui %187 : vector<1x16xi1> to vector<1x16xi32>
    %189 = arith.sitofp %188 : vector<1x16xi32> to vector<1x16xf32>
    %190 = arith.mulf %185, %189 : vector<1x16xf32>
    %191 = arith.addf %184, %190 : vector<1x16xf32>
    %c2_i32 = arith.constant 2 : i32
    %192 = tpu.dynamic_rotate %191 by %c2_i32 dim 1 : vector<1x16xf32>, i32 -> vector<1x16xf32>
    %c2_i32_88 = arith.constant 2 : i32
    %193 = vector.broadcast %c2_i32_88 : i32 to vector<1x16xi32>
    %194 = arith.cmpi sge, %18, %193 : vector<1x16xi32>
    %195 = arith.extui %194 : vector<1x16xi1> to vector<1x16xi32>
    %196 = arith.sitofp %195 : vector<1x16xi32> to vector<1x16xf32>
    %197 = arith.mulf %192, %196 : vector<1x16xf32>
    %198 = arith.addf %191, %197 : vector<1x16xf32>
    %c4_i32 = arith.constant 4 : i32
    %199 = tpu.dynamic_rotate %198 by %c4_i32 dim 1 : vector<1x16xf32>, i32 -> vector<1x16xf32>
    %c4_i32_89 = arith.constant 4 : i32
    %200 = vector.broadcast %c4_i32_89 : i32 to vector<1x16xi32>
    %201 = arith.cmpi sge, %18, %200 : vector<1x16xi32>
    %202 = arith.extui %201 : vector<1x16xi1> to vector<1x16xi32>
    %203 = arith.sitofp %202 : vector<1x16xi32> to vector<1x16xf32>
    %204 = arith.mulf %199, %203 : vector<1x16xf32>
    %205 = arith.addf %198, %204 : vector<1x16xf32>
    %206 = arith.subf %205, %184 : vector<1x16xf32>
    %207 = tpu.iota {dimensions = array<i32: 0>} : vector<48x8xi32>
    %208 = arith.sitofp %207 : vector<48x8xi32> to vector<48x8xf32>
    %209 = vector.extract_strided_slice %206 {offsets = [0, 0], sizes = [1, 8], strides = [1, 1]} : vector<1x16xf32> to vector<1x8xf32>
    %210 = vector.broadcast %209 : vector<1x8xf32> to vector<48x8xf32>
    %211 = arith.cmpf oge, %208, %210 : vector<48x8xf32>
    %212 = vector.extract_strided_slice %205 {offsets = [0, 0], sizes = [1, 8], strides = [1, 1]} : vector<1x16xf32> to vector<1x8xf32>
    %213 = vector.broadcast %212 : vector<1x8xf32> to vector<48x8xf32>
    %214 = arith.cmpf olt, %208, %213 : vector<48x8xf32>
    %215 = arith.andi %211, %214 : vector<48x8xi1>
    %216 = arith.extui %215 : vector<48x8xi1> to vector<48x8xi32>
    %217 = arith.sitofp %216 : vector<48x8xi32> to vector<48x8xf32>
    %218 = vector.extract_strided_slice %0 {offsets = [0, 0], sizes = [8, 32], strides = [1, 1]} : vector<16x32xf32> to vector<8x32xf32>
    %cst_90 = arith.constant dense<0.000000e+00> : vector<48x32xf32>
    %219 = tpu.matmul %217, %218, %cst_90 {dimension_numbers = #tpu.dot_dimension_numbers<[1], [0], [0], [1], [0, 0, 1, 1], [], []>} : vector<48x8xf32>, vector<8x32xf32>, vector<48x32xf32> -> vector<48x32xf32>
    %c0_91 = arith.constant 0 : index
    %c0_92 = arith.constant 0 : index
    %c0_93 = arith.constant 0 : index
    %220 = vector.load %arg14[%c0_91, %c0_92, %c0_93] : memref<2x48x32xf32, #tpu.memory_space<vmem>>, vector<1x48x32xf32>
    %221 = vector.shape_cast %220 : vector<1x48x32xf32> to vector<48x32xf32>
    %222 = vector.shape_cast %219 : vector<48x32xf32> to vector<1x48x32xf32>
    tpu.vector_store %arg14[%c0_91, %c0_92, %c0_93], %222 {strides = array<i32>} : memref<2x48x32xf32, #tpu.memory_space<vmem>>, vector<1x48x32xf32>,
    %223 = vector.extract_strided_slice %206 {offsets = [0, 8], sizes = [1, 8], strides = [1, 1]} : vector<1x16xf32> to vector<1x8xf32>
    %224 = vector.broadcast %223 : vector<1x8xf32> to vector<48x8xf32>
    %225 = arith.cmpf oge, %208, %224 : vector<48x8xf32>
    %226 = vector.extract_strided_slice %205 {offsets = [0, 8], sizes = [1, 8], strides = [1, 1]} : vector<1x16xf32> to vector<1x8xf32>
    %227 = vector.broadcast %226 : vector<1x8xf32> to vector<48x8xf32>
    %228 = arith.cmpf olt, %208, %227 : vector<48x8xf32>
    %229 = arith.andi %225, %228 : vector<48x8xi1>
    %230 = arith.extui %229 : vector<48x8xi1> to vector<48x8xi32>
    %231 = arith.sitofp %230 : vector<48x8xi32> to vector<48x8xf32>
    %232 = vector.extract_strided_slice %0 {offsets = [8, 0], sizes = [8, 32], strides = [1, 1]} : vector<16x32xf32> to vector<8x32xf32>
    %cst_94 = arith.constant dense<0.000000e+00> : vector<48x32xf32>
    %233 = tpu.matmul %231, %232, %cst_94 {dimension_numbers = #tpu.dot_dimension_numbers<[1], [0], [0], [1], [0, 0, 1, 1], [], []>} : vector<48x8xf32>, vector<8x32xf32>, vector<48x32xf32> -> vector<48x32xf32>
    %c1_95 = arith.constant 1 : index
    %c0_96 = arith.constant 0 : index
    %c0_97 = arith.constant 0 : index
    %234 = vector.load %arg14[%c1_95, %c0_96, %c0_97] : memref<2x48x32xf32, #tpu.memory_space<vmem>>, vector<1x48x32xf32>
    %235 = vector.shape_cast %234 : vector<1x48x32xf32> to vector<48x32xf32>
    %236 = vector.shape_cast %233 : vector<48x32xf32> to vector<1x48x32xf32>
    tpu.vector_store %arg14[%c1_95, %c0_96, %c0_97], %236 {strides = array<i32>} : memref<2x48x32xf32, #tpu.memory_space<vmem>>, vector<1x48x32xf32>,
    return
  }
}

</mosaic_0001>

<llo_original>
// kernel: tpu_custom_call.1
$region0: #{tpu_custom_call.1}
  #allocation0 [shape = 'u32[]', space=smem, size = 0x4, offset = 0x4, fixed_abs, tag = 'smem constant byte address 0x4 - core index']
  #allocation1 [shape = 'u32[144,128]{1,0:T(1,128)}', space=vmem, size = 0x12000, scoped, tag = 'internal scratch']
  #allocation2 [shape = 'f32[1,1]{1,0:T(1,128)S(1)}', space=vmem, size = 0x200, scoped, tag = 'scoped memory for tpu_custom_call.1']
  %s0 = inlined_call_operand.vmem [shape: f32[16,32], index: 0, kind: input, shape index: {}]
  %s1 = inlined_call_operand.vmem [shape: f32[1,16], index: 1, kind: input, shape index: {}]
  %s2 = inlined_call_operand.vmem [shape: f32[3,32,32], index: 2, kind: input, shape index: {}]
  %s3 = inlined_call_operand.vmem [shape: f32[32,1], index: 3, kind: input, shape index: {}]
  %s4 = inlined_call_operand.vmem [shape: f32[32,1], index: 4, kind: input, shape index: {}]
  %s5 = inlined_call_operand.vmem [shape: f32[32,1], index: 5, kind: input, shape index: {}]
  %s6 = inlined_call_operand.vmem [shape: f32[3,32,32], index: 6, kind: input, shape index: {}]
  %s7 = inlined_call_operand.vmem [shape: f32[32,1], index: 7, kind: input, shape index: {}]
  %s8 = inlined_call_operand.vmem [shape: f32[32,1], index: 8, kind: input, shape index: {}]
  %s9 = inlined_call_operand.vmem [shape: f32[32,1], index: 9, kind: input, shape index: {}]
  %s10 = inlined_call_operand.vmem [shape: f32[32,1], index: 10, kind: input, shape index: {}]
  %s11 = inlined_call_operand.<no memory space> [shape: f32[1,1], index: 11, kind: input, shape index: {}]
  %s12 = inlined_call_operand.hbm [shape: f32[1,16], index: 12, kind: output, shape index: {0}]
  %s13 = inlined_call_operand.hbm [shape: f32[1,16], index: 13, kind: output, shape index: {1}]
  %s14 = inlined_call_operand.vmem [shape: f32[2,48,32], index: 14, kind: output, shape index: {2}]
  %15 = xla_tuple %s12, %s13, %s14
  %s16 = sld [smem:[#allocation0]]
  $region74: #{tpu_custom_call.1} parent=0
    _
  %s18 = ssub.s32 1, %s16
  %s19 = scalar_select 0, %s18, %s16
  %v20 = vstv %s11
  %21 = vst [vmem:[#allocation2] sm:$0x1] %v20
  $region1: #{tpu_custom_call.1} parent=0
    #allocation3 [shape = 'u8[512]{0}', space=vmem, size = 0x400, scoped, tag = 'output window, operand 0, single buffered']
    #allocation4 [shape = 's32[1]{0}', space=sflag, size = 0x4, scoped, tag = 'scoped memory for tpu_custom_call.1']
    #allocation5 [shape = 'u8[512]{0}', space=vmem, size = 0x400, scoped, tag = 'output window, operand 1, single buffered']
    #allocation6 [shape = 's32[1]{0}', space=sflag, size = 0x4, scoped, tag = 'scoped memory for tpu_custom_call.1']
    %22 = vsyncpa [#allocation4], 0
    %23 = vsyncpa [#allocation6], 0
    // Predicated region
    $region2: #{tpu_custom_call.1} parent=1 // pred_check
      _
    $region3: #{tpu_custom_call.1} parent=1 // pred_check_branch
      %25 = sbr.rel (0) target = $region5
    $region4: #{tpu_custom_call.1} parent=1 // pred_region
      _
    $region5: #{tpu_custom_call.1} parent=1 // pred_fallthru
      _
    // Predicated region
    $region6: #{tpu_custom_call.1} parent=1 // pred_check
      _
    $region7: #{tpu_custom_call.1} parent=1 // pred_check_branch
      %27 = sbr.rel (0) target = $region9
    $region8: #{tpu_custom_call.1} parent=1 // pred_region
      _
    $region9: #{tpu_custom_call.1} parent=1 // pred_fallthru
      _
    // Predicated region
    $region10: #{tpu_custom_call.1} parent=1 // pred_check
      _
    $region11: #{tpu_custom_call.1} parent=1 // pred_check_branch
      %29 = sbr.rel (0) target = $region13
    $region12: #{tpu_custom_call.1} parent=1 // pred_region
      _
    $region13: #{tpu_custom_call.1} parent=1 // pred_fallthru
      _
    // Predicated region
    $region14: #{tpu_custom_call.1} parent=1 // pred_check
      _
    $region15: #{tpu_custom_call.1} parent=1 // pred_check_branch
      %31 = sbr.rel (0) target = $region17
    $region16: #{tpu_custom_call.1} parent=1 // pred_region
      _
    $region17: #{tpu_custom_call.1} parent=1 // pred_fallthru
      _
    // Predicated region
    $region18: #{tpu_custom_call.1} parent=1 // pred_check
      _
    $region19: #{tpu_custom_call.1} parent=1 // pred_check_branch
      %33 = sbr.rel (0) target = $region21
    $region20: #{tpu_custom_call.1} parent=1 // pred_region
      _
    $region21: #{tpu_custom_call.1} parent=1 // pred_fallthru
      _
    // Predicated region
    $region22: #{tpu_custom_call.1} parent=1 // pred_check
      _
    $region23: #{tpu_custom_call.1} parent=1 // pred_check_branch
      %35 = sbr.rel (0) target = $region25
    $region24: #{tpu_custom_call.1} parent=1 // pred_region
      _
    $region25: #{tpu_custom_call.1} parent=1 // pred_fallthru
      _
    // Predicated region
    $region26: #{tpu_custom_call.1} parent=1 // pred_check
      _
    $region27: #{tpu_custom_call.1} parent=1 // pred_check_branch
      %37 = sbr.rel (0) target = $region29
    $region28: #{tpu_custom_call.1} parent=1 // pred_region
      _
    $region29: #{tpu_custom_call.1} parent=1 // pred_fallthru
      _
    // Predicated region
    $region30: #{tpu_custom_call.1} parent=1 // pred_check
      _
    $region31: #{tpu_custom_call.1} parent=1 // pred_check_branch
      %39 = sbr.rel (0) target = $region33
    $region32: #{tpu_custom_call.1} parent=1 // pred_region
      _
    $region33: #{tpu_custom_call.1} parent=1 // pred_fallthru
      _
    // Predicated region
    $region34: #{tpu_custom_call.1} parent=1 // pred_check
      _
    $region35: #{tpu_custom_call.1} parent=1 // pred_check_branch
      %41 = sbr.rel (0) target = $region37
    $region36: #{tpu_custom_call.1} parent=1 // pred_region
      _
    $region37: #{tpu_custom_call.1} parent=1 // pred_fallthru
      _
    // Predicated region
    $region38: #{tpu_custom_call.1} parent=1 // pred_check
      _
    $region39: #{tpu_custom_call.1} parent=1 // pred_check_branch
      %43 = sbr.rel (0) target = $region41
    $region40: #{tpu_custom_call.1} parent=1 // pred_region
      _
    $region41: #{tpu_custom_call.1} parent=1 // pred_fallthru
      _
    // Predicated region
    $region42: #{tpu_custom_call.1} parent=1 // pred_check
      _
    $region43: #{tpu_custom_call.1} parent=1 // pred_check_branch
      %45 = sbr.rel (0) target = $region45
    $region44: #{tpu_custom_call.1} parent=1 // pred_region
      _
    $region45: #{tpu_custom_call.1} parent=1 // pred_fallthru
      _
    // Predicated region
    $region46: #{tpu_custom_call.1} parent=1 // pred_check
      _
    $region47: #{tpu_custom_call.1} parent=1 // pred_check_branch
      %47 = sbr.rel (0) target = $region49
    $region48: #{tpu_custom_call.1} parent=1 // pred_region
      _
    $region49: #{tpu_custom_call.1} parent=1 // pred_fallthru
      _
    %v48 = vld [vmem:[%s0] sm:$0xff]
    %v49 = vld [vmem:[%s0 + $0x8] sm:$0xff]
    %50 = vxpose.xlu0.b32.start [1/16] %v48, 128
    %51 = vxpose.xlu0.b32.cont [2/16] %v49, 128
    %52 = vxpose.xlu0.b32.cont [3/16] 0.0, 128
    %53 = vxpose.xlu0.b32.cont [4/16] 0.0, 128
    %54 = vxpose.xlu0.b32.cont [5/16] 0.0, 128
    %55 = vxpose.xlu0.b32.cont [6/16] 0.0, 128
    %56 = vxpose.xlu0.b32.cont [7/16] 0.0, 128
    %57 = vxpose.xlu0.b32.cont [8/16] 0.0, 128
    %58 = vxpose.xlu0.b32.cont [9/16] 0.0, 128
    %59 = vxpose.xlu0.b32.cont [10/16] 0.0, 128
    %60 = vxpose.xlu0.b32.cont [11/16] 0.0, 128
    %61 = vxpose.xlu0.b32.cont [12/16] 0.0, 128
    %62 = vxpose.xlu0.b32.cont [13/16] 0.0, 128
    %63 = vxpose.xlu0.b32.cont [14/16] 0.0, 128
    %64 = vxpose.xlu0.b32.cont [15/16] 0.0, 128
    %65 = vxpose.xlu0.b32.end [16/16] 0.0, 128
    %v66 = vpop.trf.xlu0
    %v67 = vpop.trf.xlu0
    %v68 = vpop.trf.xlu0
    %v69 = vpop.trf.xlu0
    %v70 = vpop.trf.xlu0
    %v71 = vpop.trf.xlu0
    %v72 = vpop.trf.xlu0
    %v73 = vpop.trf.xlu0
    %v74 = vpop.trf.xlu0
    %v75 = vpop.trf.xlu0
    %v76 = vpop.trf.xlu0
    %v77 = vpop.trf.xlu0
    %v78 = vpop.trf.xlu0
    %v79 = vpop.trf.xlu0
    %v80 = vpop.trf.xlu0
    %v81 = vpop.trf.xlu0
    %v82 = vlaneseq
    %v83 = vand.u32 %v82, 127
    %vm84 = vcmp.lt.s32.totalorder %v83, 0
    %v85 = vsub.s32 0, %v83
    %v86 = vsel %vm84, %v85, %v83
    %v87 = vshrl.u32 %v86, 3
    %v88 = vand.u32 %v86, 7
    %v89 = vsub.s32 0, %v88
    %v90 = vsel %vm84, %v89, %v88
    %vm91 = vcmp.ne.s32.totalorder %v90, 0
    %vm92 = vcmp.lt.s32.totalorder %v90, 0
    %vm93 = vmand %vm92, %vm91
    %v94 = vadd.s32 %v90, 8
    %v95 = vsel %vm93, %v94, %v90
    %vm96 = vcmask 1047680
    %97 = vrot.lane.b32.xlu0 %v66, 16
    %v98 = vpop.permute.xlu0 %97
    %v99 = vsel %vm96, %v98, %v66
    %100 = vrot.lane.b32.xlu0 %v67, 16
    %v101 = vpop.permute.xlu0 %100
    %v102 = vsel %vm96, %v101, %v67
    %103 = vrot.lane.b32.xlu0 %v68, 16
    %v104 = vpop.permute.xlu0 %103
    %v105 = vsel %vm96, %v104, %v68
    %106 = vrot.lane.b32.xlu0 %v69, 16
    %v107 = vpop.permute.xlu0 %106
    %v108 = vsel %vm96, %v107, %v69
    %109 = vrot.lane.b32.xlu0 %v99, 16
    %v110 = vpop.permute.xlu0 %109
    %111 = vrot.lane.b32.xlu0 %v102, 16
    %v112 = vpop.permute.xlu0 %111
    %113 = vrot.lane.b32.xlu0 %v105, 16
    %v114 = vpop.permute.xlu0 %113
    %115 = vrot.lane.b32.xlu0 %v108, 16
    %v116 = vpop.permute.xlu0 %115
    %v117 = vsel %vm96, %v110, %v66
    %v118 = vsel %vm96, %v112, %v67
    %v119 = vsel %vm96, %v114, %v68
    %v120 = vsel %vm96, %v116, %v69
    %v121 = vadd.s32 %v95, 4294967295
    %vm122 = vcmp.ge.s32.totalorder %v121, 0
    %vm123 = vcmp.lt.s32.totalorder %v121, 8
    %vm124 = vmand %vm122, %vm123
    %v125 = vsel %vm124, 1, 0
    %v126 = vcvt.s32.f32 %v125
    %128 = vrot.lane.b32.xlu0 %v126, 15
    %v129 = vpop.permute.xlu0 %128
    %v131 = vmul.f32 %v117, %v129
    %v132 = vmul.f32 %v118, %v129
    %v133 = vmul.f32 %v119, %v129
    %v134 = vmul.f32 %v120, %v129
    %v135 = vld [vmem:[%s2] sm:$0xff]
    %v136 = vld [vmem:[%s2 + $0x8] sm:$0xff]
    %v137 = vld [vmem:[%s2 + $0x10] sm:$0xff]
    %v138 = vld [vmem:[%s2 + $0x18] sm:$0xff]
    %s139 = scalar_lea.vmem %s2, 32
    %v140 = vld [vmem:[%s139] sm:$0xff]
    %v141 = vld [vmem:[%s139 + $0x8] sm:$0xff]
    %v142 = vld [vmem:[%s139 + $0x10] sm:$0xff]
    %v143 = vld [vmem:[%s139 + $0x18] sm:$0xff]
    %vm144 = vcmask 261120
    %v146 = vsel %vm144, %v140, 0
    %v149 = vsel %vm144, %v141, 0
    %v152 = vsel %vm144, %v142, 0
    %v155 = vsel %vm144, %v143, 0
    %157 = vmatprep.subr.mxu0 0.0
    %158 = vmatpush1.msra.mxu0 %v66
    %159 = vmatprep.subr.mxu0 0.0
    %160 = vmatpush1.msra.mxu0 %v67
    %161 = vmatprep.subr.mxu0 0.0
    %162 = vmatpush1.msra.mxu0 %v68
    %163 = vmatprep.subr.mxu0 0.0
    %164 = vmatpush1.msra.mxu0 %v69
    %165 = vmatprep.subr.mxu0 0.0
    %166 = vmatpush1.msra.mxu0 0.0
    %167 = vmatprep.subr.mxu0 0.0
    %168 = vmatpush1.msra.mxu0 0.0
    %169 = vmatprep.subr.mxu0 0.0
    %170 = vmatpush1.msra.mxu0 0.0
    %171 = vmatprep.subr.mxu0 0.0
    %172 = vmatpush1.msra.mxu0 0.0
    %173 = vmatprep.subr.mxu0 0.0
    %174 = vmatpush1.msra.mxu0 0.0
    %175 = vmatprep.subr.mxu0 0.0
    %176 = vmatpush1.msra.mxu0 0.0
    %177 = vmatprep.subr.mxu0 0.0
    %178 = vmatpush1.msra.mxu0 0.0
    %179 = vmatprep.subr.mxu0 0.0
    %180 = vmatpush1.msra.mxu0 0.0
    %181 = vmatprep.subr.mxu0 0.0
    %182 = vmatpush1.msra.mxu0 0.0
    %183 = vmatprep.subr.mxu0 0.0
    %184 = vmatpush1.msra.mxu0 0.0
    %185 = vmatprep.subr.mxu0 0.0
    %186 = vmatpush1.msra.mxu0 0.0
    %187 = vmatprep.subr.mxu0 0.0
    %188 = vmatpush1.msra.mxu0 0.0
    %189 = vmatprep.subr.mxu0 0.0
    %190 = vmatpush1.msra.mxu0 0.0
    %191 = vmatprep.subr.mxu0 0.0
    %192 = vmatpush1.msra.mxu0 0.0
    %193 = vmatprep.subr.mxu0 0.0
    %194 = vmatpush1.msra.mxu0 0.0
    %195 = vmatprep.subr.mxu0 0.0
    %196 = vmatpush1.msra.mxu0 0.0
    %197 = vmatprep.subr.mxu0 0.0
    %198 = vmatpush1.msra.mxu0 0.0
    %199 = vmatprep.subr.mxu0 0.0
    %200 = vmatpush1.msra.mxu0 0.0
    %201 = vmatprep.subr.mxu0 0.0
    %202 = vmatpush1.msra.mxu0 0.0
    %203 = vmatprep.subr.mxu0 0.0
    %204 = vmatpush1.msra.mxu0 0.0
    %205 = vmatprep.subr.mxu0 0.0
    %206 = vmatpush1.msra.mxu0 0.0
    %207 = vmatprep.subr.mxu0 0.0
    %208 = vmatpush1.msra.mxu0 0.0
    %209 = vmatprep.subr.mxu0 0.0
    %210 = vmatpush1.msra.mxu0 0.0
    %211 = vmatprep.subr.mxu0 0.0
    %212 = vmatpush1.msra.mxu0 0.0
    %213 = vmatprep.subr.mxu0 0.0
    %214 = vmatpush1.msra.mxu0 0.0
    %215 = vmatprep.subr.mxu0 0.0
    %216 = vmatpush1.msra.mxu0 0.0
    %217 = vmatprep.subr.mxu0 0.0
    %218 = vmatpush1.msra.mxu0 0.0
    %219 = vmatprep.subr.mxu0 0.0
    %220 = vmatpush1.msra.mxu0 0.0
    %221 = vmatprep.mubr.f32.mxu0 0.0
    %222 = vmatmul.mubr.f32.gmra.mrb[0].mxu0 %v146
    %v223 = vpop.f32.mrb[0].mxu0
    %v224 = vadd.f32 0.0, %v223
    %v225 = vpop.f32.mrb[0].mxu0
    %226 = vmatprep.mubr.f32.mxu0 0.0
    %227 = vmatmul.mubr.f32.gmra.mrb[0].mxu0 %v149
    %v228 = vpop.f32.mrb[0].mxu0
    %v229 = vadd.f32 0.0, %v228
    %v230 = vpop.f32.mrb[0].mxu0
    %231 = vmatprep.mubr.f32.mxu0 0.0
    %232 = vmatmul.mubr.f32.gmra.mrb[0].mxu0 %v152
    %v233 = vpop.f32.mrb[0].mxu0
    %v234 = vadd.f32 0.0, %v233
    %v235 = vpop.f32.mrb[0].mxu0
    %236 = vmatprep.mubr.f32.mxu0 0.0
    %237 = vmatmul.mubr.f32.gmra.mrb[0].mxu0 %v155
    %v238 = vpop.f32.mrb[0].mxu0
    %v239 = vadd.f32 0.0, %v238
    %v240 = vpop.f32.mrb[0].mxu0
    %241 = vdwg.mxu0
    %246 = vrot.lane.b32.xlu0 %v131, 113
    %v247 = vpop.permute.xlu0 %246
    %248 = vrot.lane.b32.xlu0 %v132, 113
    %v249 = vpop.permute.xlu0 %248
    %250 = vrot.lane.b32.xlu0 %v133, 113
    %v251 = vpop.permute.xlu0 %250
    %252 = vrot.lane.b32.xlu0 %v134, 113
    %v253 = vpop.permute.xlu0 %252
    %v259 = vsel %vm144, %v135, 0
    %v262 = vsel %vm144, %v136, 0
    %v265 = vsel %vm144, %v137, 0
    %v268 = vsel %vm144, %v138, 0
    %270 = vmatprep.subr.mxu0 0.0
    %271 = vmatpush1.msra.mxu0 %v247
    %272 = vmatprep.subr.mxu0 0.0
    %273 = vmatpush1.msra.mxu0 %v249
    %274 = vmatprep.subr.mxu0 0.0
    %275 = vmatpush1.msra.mxu0 %v251
    %276 = vmatprep.subr.mxu0 0.0
    %277 = vmatpush1.msra.mxu0 %v253
    %278 = vmatprep.subr.mxu0 0.0
    %279 = vmatpush1.msra.mxu0 0.0
    %280 = vmatprep.subr.mxu0 0.0
    %281 = vmatpush1.msra.mxu0 0.0
    %282 = vmatprep.subr.mxu0 0.0
    %283 = vmatpush1.msra.mxu0 0.0
    %284 = vmatprep.subr.mxu0 0.0
    %285 = vmatpush1.msra.mxu0 0.0
    %286 = vmatprep.subr.mxu0 0.0
    %287 = vmatpush1.msra.mxu0 0.0
    %288 = vmatprep.subr.mxu0 0.0
    %289 = vmatpush1.msra.mxu0 0.0
    %290 = vmatprep.subr.mxu0 0.0
    %291 = vmatpush1.msra.mxu0 0.0
    %292 = vmatprep.subr.mxu0 0.0
    %293 = vmatpush1.msra.mxu0 0.0
    %294 = vmatprep.subr.mxu0 0.0
    %295 = vmatpush1.msra.mxu0 0.0
    %296 = vmatprep.subr.mxu0 0.0
    %297 = vmatpush1.msra.mxu0 0.0
    %298 = vmatprep.subr.mxu0 0.0
    %299 = vmatpush1.msra.mxu0 0.0
    %300 = vmatprep.subr.mxu0 0.0
    %301 = vmatpush1.msra.mxu0 0.0
    %302 = vmatprep.subr.mxu0 0.0
    %303 = vmatpush1.msra.mxu0 0.0
    %304 = vmatprep.subr.mxu0 0.0
    %305 = vmatpush1.msra.mxu0 0.0
    %306 = vmatprep.subr.mxu0 0.0
    %307 = vmatpush1.msra.mxu0 0.0
    %308 = vmatprep.subr.mxu0 0.0
    %309 = vmatpush1.msra.mxu0 0.0
    %310 = vmatprep.subr.mxu0 0.0
    %311 = vmatpush1.msra.mxu0 0.0
    %312 = vmatprep.subr.mxu0 0.0
    %313 = vmatpush1.msra.mxu0 0.0
    %314 = vmatprep.subr.mxu0 0.0
    %315 = vmatpush1.msra.mxu0 0.0
    %316 = vmatprep.subr.mxu0 0.0
    %317 = vmatpush1.msra.mxu0 0.0
    %318 = vmatprep.subr.mxu0 0.0
    %319 = vmatpush1.msra.mxu0 0.0
    %320 = vmatprep.subr.mxu0 0.0
    %321 = vmatpush1.msra.mxu0 0.0
    %322 = vmatprep.subr.mxu0 0.0
    %323 = vmatpush1.msra.mxu0 0.0
    %324 = vmatprep.subr.mxu0 0.0
    %325 = vmatpush1.msra.mxu0 0.0
    %326 = vmatprep.subr.mxu0 0.0
    %327 = vmatpush1.msra.mxu0 0.0
    %328 = vmatprep.subr.mxu0 0.0
    %329 = vmatpush1.msra.mxu0 0.0
    %330 = vmatprep.subr.mxu0 0.0
    %331 = vmatpush1.msra.mxu0 0.0
    %332 = vmatprep.subr.mxu0 0.0
    %333 = vmatpush1.msra.mxu0 0.0
    %334 = vmatprep.mubr.f32.mxu0 0.0
    %335 = vmatmul.mubr.f32.gmra.mrb[0].mxu0 %v259
    %v336 = vpop.f32.mrb[0].mxu0
    %v337 = vadd.f32 %v224, %v336
    %v338 = vpop.f32.mrb[0].mxu0
    %339 = vmatprep.mubr.f32.mxu0 0.0
    %340 = vmatmul.mubr.f32.gmra.mrb[0].mxu0 %v262
    %v341 = vpop.f32.mrb[0].mxu0
    %v342 = vadd.f32 %v229, %v341
    %v343 = vpop.f32.mrb[0].mxu0
    %344 = vmatprep.mubr.f32.mxu0 0.0
    %345 = vmatmul.mubr.f32.gmra.mrb[0].mxu0 %v265
    %v346 = vpop.f32.mrb[0].mxu0
    %v347 = vadd.f32 %v234, %v346
    %v348 = vpop.f32.mrb[0].mxu0
    %349 = vmatprep.mubr.f32.mxu0 0.0
    %350 = vmatmul.mubr.f32.gmra.mrb[0].mxu0 %v268
    %v351 = vpop.f32.mrb[0].mxu0
    %v352 = vadd.f32 %v239, %v351
    %v353 = vpop.f32.mrb[0].mxu0
    %354 = vdwg.mxu0
    %v355 = vadd.s32 %v95, 1
    %vm356 = vcmp.ge.s32.totalorder %v355, 0
    %vm357 = vcmp.lt.s32.totalorder %v355, 8
    %vm358 = vmand %vm356, %vm357
    %v359 = vsel %vm358, 1, 0
    %v360 = vcvt.s32.f32 %v359
    %362 = vrot.lane.b32.xlu0 %v360, 1
    %v363 = vpop.permute.xlu0 %362
    %v365 = vmul.f32 %v117, %v363
    %v366 = vmul.f32 %v118, %v363
    %v367 = vmul.f32 %v119, %v363
    %v368 = vmul.f32 %v120, %v363
    %s369 = scalar_lea.vmem %s2, 64
    %v370 = vld [vmem:[%s369] sm:$0xff]
    %v371 = vld [vmem:[%s369 + $0x8] sm:$0xff]
    %v372 = vld [vmem:[%s369 + $0x10] sm:$0xff]
    %v373 = vld [vmem:[%s369 + $0x18] sm:$0xff]
    %378 = vrot.lane.b32.xlu0 %v365, 127
    %v379 = vpop.permute.xlu0 %378
    %380 = vrot.lane.b32.xlu0 %v366, 127
    %v381 = vpop.permute.xlu0 %380
    %382 = vrot.lane.b32.xlu0 %v367, 127
    %v383 = vpop.permute.xlu0 %382
    %384 = vrot.lane.b32.xlu0 %v368, 127
    %v385 = vpop.permute.xlu0 %384
    %v391 = vsel %vm144, %v370, 0
    %v394 = vsel %vm144, %v371, 0
    %v397 = vsel %vm144, %v372, 0
    %v400 = vsel %vm144, %v373, 0
    %402 = vmatprep.subr.mxu0 0.0
    %403 = vmatpush1.msra.mxu0 %v379
    %404 = vmatprep.subr.mxu0 0.0
    %405 = vmatpush1.msra.mxu0 %v381
    %406 = vmatprep.subr.mxu0 0.0
    %407 = vmatpush1.msra.mxu0 %v383
    %408 = vmatprep.subr.mxu0 0.0
    %409 = vmatpush1.msra.mxu0 %v385
    %410 = vmatprep.subr.mxu0 0.0
    %411 = vmatpush1.msra.mxu0 0.0
    %412 = vmatprep.subr.mxu0 0.0
    %413 = vmatpush1.msra.mxu0 0.0
    %414 = vmatprep.subr.mxu0 0.0
    %415 = vmatpush1.msra.mxu0 0.0
    %416 = vmatprep.subr.mxu0 0.0
    %417 = vmatpush1.msra.mxu0 0.0
    %418 = vmatprep.subr.mxu0 0.0
    %419 = vmatpush1.msra.mxu0 0.0
    %420 = vmatprep.subr.mxu0 0.0
    %421 = vmatpush1.msra.mxu0 0.0
    %422 = vmatprep.subr.mxu0 0.0
    %423 = vmatpush1.msra.mxu0 0.0
    %424 = vmatprep.subr.mxu0 0.0
    %425 = vmatpush1.msra.mxu0 0.0
    %426 = vmatprep.subr.mxu0 0.0
    %427 = vmatpush1.msra.mxu0 0.0
    %428 = vmatprep.subr.mxu0 0.0
    %429 = vmatpush1.msra.mxu0 0.0
    %430 = vmatprep.subr.mxu0 0.0
    %431 = vmatpush1.msra.mxu0 0.0
    %432 = vmatprep.subr.mxu0 0.0
    %433 = vmatpush1.msra.mxu0 0.0
    %434 = vmatprep.subr.mxu0 0.0
    %435 = vmatpush1.msra.mxu0 0.0
    %436 = vmatprep.subr.mxu0 0.0
    %437 = vmatpush1.msra.mxu0 0.0
    %438 = vmatprep.subr.mxu0 0.0
    %439 = vmatpush1.msra.mxu0 0.0
    %440 = vmatprep.subr.mxu0 0.0
    %441 = vmatpush1.msra.mxu0 0.0
    %442 = vmatprep.subr.mxu0 0.0
    %443 = vmatpush1.msra.mxu0 0.0
    %444 = vmatprep.subr.mxu0 0.0
    %445 = vmatpush1.msra.mxu0 0.0
    %446 = vmatprep.subr.mxu0 0.0
    %447 = vmatpush1.msra.mxu0 0.0
    %448 = vmatprep.subr.mxu0 0.0
    %449 = vmatpush1.msra.mxu0 0.0
    %450 = vmatprep.subr.mxu0 0.0
    %451 = vmatpush1.msra.mxu0 0.0
    %452 = vmatprep.subr.mxu0 0.0
    %453 = vmatpush1.msra.mxu0 0.0
    %454 = vmatprep.subr.mxu0 0.0
    %455 = vmatpush1.msra.mxu0 0.0
    %456 = vmatprep.subr.mxu0 0.0
    %457 = vmatpush1.msra.mxu0 0.0
    %458 = vmatprep.subr.mxu0 0.0
    %459 = vmatpush1.msra.mxu0 0.0
    %460 = vmatprep.subr.mxu0 0.0
    %461 = vmatpush1.msra.mxu0 0.0
    %462 = vmatprep.subr.mxu0 0.0
    %463 = vmatpush1.msra.mxu0 0.0
    %464 = vmatprep.subr.mxu0 0.0
    %465 = vmatpush1.msra.mxu0 0.0
    %466 = vmatprep.mubr.f32.mxu0 0.0
    %467 = vmatmul.mubr.f32.gmra.mrb[0].mxu0 %v391
    %v468 = vpop.f32.mrb[0].mxu0
    %v469 = vadd.f32 0.0, %v468
    %v470 = vpop.f32.mrb[0].mxu0
    %471 = vmatprep.mubr.f32.mxu0 0.0
    %472 = vmatmul.mubr.f32.gmra.mrb[0].mxu0 %v394
    %v473 = vpop.f32.mrb[0].mxu0
    %v474 = vadd.f32 0.0, %v473
    %v475 = vpop.f32.mrb[0].mxu0
    %476 = vmatprep.mubr.f32.mxu0 0.0
    %477 = vmatmul.mubr.f32.gmra.mrb[0].mxu0 %v397
    %v478 = vpop.f32.mrb[0].mxu0
    %v479 = vadd.f32 0.0, %v478
    %v480 = vpop.f32.mrb[0].mxu0
    %481 = vmatprep.mubr.f32.mxu0 0.0
    %482 = vmatmul.mubr.f32.gmra.mrb[0].mxu0 %v400
    %v483 = vpop.f32.mrb[0].mxu0
    %v484 = vadd.f32 0.0, %v483
    %v485 = vpop.f32.mrb[0].mxu0
    %486 = vdwg.mxu0
    %v487 = vadd.f32 %v337, %v469
    %v488 = vadd.f32 %v342, %v474
    %v489 = vadd.f32 %v347, %v479
    %v490 = vadd.f32 %v352, %v484
    %v491 = vld [vmem:[%s3] sm:$0xff]
    %v492 = vld [vmem:[%s3 + $0x8] sm:$0xff]
    %v493 = vld [vmem:[%s3 + $0x10] sm:$0xff]
    %v494 = vld [vmem:[%s3 + $0x18] sm:$0xff]
    %496 = vset.pattern.permute.xlu0 0
    %497 = vperm.xlu0 %496, %v491
    %v498 = vpop.permute.xlu0 %497
    %501 = vset.pattern.permute.xlu0 0
    %502 = vperm.xlu0 %501, %v492
    %v503 = vpop.permute.xlu0 %502
    %506 = vset.pattern.permute.xlu0 0
    %507 = vperm.xlu0 %506, %v493
    %v508 = vpop.permute.xlu0 %507
    %511 = vset.pattern.permute.xlu0 0
    %512 = vperm.xlu0 %511, %v494
    %v513 = vpop.permute.xlu0 %512
    %v515 = vadd.f32 %v487, %v498
    %v516 = vadd.f32 %v488, %v503
    %v517 = vadd.f32 %v489, %v508
    %v518 = vadd.f32 %v490, %v513
    %v519 = vmax.f32 %v515, 0.0
    %v520 = vmax.f32 %v516, 0.0
    %v521 = vmax.f32 %v517, 0.0
    %v522 = vmax.f32 %v518, 0.0
    %v523 = vld [vmem:[%s4] sm:$0xff]
    %v524 = vld [vmem:[%s4 + $0x8] sm:$0xff]
    %v525 = vld [vmem:[%s4 + $0x10] sm:$0xff]
    %v526 = vld [vmem:[%s4 + $0x18] sm:$0xff]
    %v527 = vld [vmem:[%s5] sm:$0xff]
    %v528 = vld [vmem:[%s5 + $0x8] sm:$0xff]
    %v529 = vld [vmem:[%s5 + $0x10] sm:$0xff]
    %v530 = vld [vmem:[%s5 + $0x18] sm:$0xff]
    %vm531 = vcmask 130048
    %v532 = vsel %vm531, %v519, 0.0
    %v533 = vsel %vm531, %v520, 0.0
    %v534 = vadd.f32 %v532, %v533
    %v535 = vsel %vm531, %v521, 0.0
    %v536 = vadd.f32 %v534, %v535
    %v537 = vsel %vm531, %v522, 0.0
    %v538 = vadd.f32 %v536, %v537
    %v539 = vrot.slane %v538, 4
    %v540 = vadd.f32 %v538, %v539
    %v541 = vrot.slane %v540, 2
    %v542 = vadd.f32 %v540, %v541
    %v543 = vrot.slane %v542, 1
    %v544 = vadd.f32 %v542, %v543
    %v545 = vrcp.pop 32.0
    %v546 = vmul.f32 %v544, %v545
    %v547 = vsub.f32 %v519, %v546
    %v548 = vsub.f32 %v520, %v546
    %v549 = vsub.f32 %v521, %v546
    %v550 = vsub.f32 %v522, %v546
    %v551 = vmul.f32 %v547, %v547
    %v552 = vmul.f32 %v548, %v548
    %v553 = vmul.f32 %v549, %v549
    %v554 = vmul.f32 %v550, %v550
    %v555 = vsel %vm531, %v551, 0.0
    %v556 = vsel %vm531, %v552, 0.0
    %v557 = vadd.f32 %v555, %v556
    %v558 = vsel %vm531, %v553, 0.0
    %v559 = vadd.f32 %v557, %v558
    %v560 = vsel %vm531, %v554, 0.0
    %v561 = vadd.f32 %v559, %v560
    %v562 = vrot.slane %v561, 4
    %v563 = vadd.f32 %v561, %v562
    %v564 = vrot.slane %v563, 2
    %v565 = vadd.f32 %v563, %v564
    %v566 = vrot.slane %v565, 1
    %v567 = vadd.f32 %v565, %v566
    %v568 = vmul.f32 %v567, %v545
    %v569 = vadd.f32 %v568, 1e-05
    %v570 = vrsqrt.pop %v569
    %v571 = vmul.f32 %v547, %v570
    %v572 = vmul.f32 %v548, %v570
    %v573 = vmul.f32 %v549, %v570
    %v574 = vmul.f32 %v550, %v570
    %576 = vset.pattern.permute.xlu0 0
    %577 = vperm.xlu0 %576, %v523
    %v578 = vpop.permute.xlu0 %577
    %581 = vset.pattern.permute.xlu0 0
    %582 = vperm.xlu0 %581, %v524
    %v583 = vpop.permute.xlu0 %582
    %586 = vset.pattern.permute.xlu0 0
    %587 = vperm.xlu0 %586, %v525
    %v588 = vpop.permute.xlu0 %587
    %591 = vset.pattern.permute.xlu0 0
    %592 = vperm.xlu0 %591, %v526
    %v593 = vpop.permute.xlu0 %592
    %v595 = vmul.f32 %v571, %v578
    %v596 = vmul.f32 %v572, %v583
    %v597 = vmul.f32 %v573, %v588
    %v598 = vmul.f32 %v574, %v593
    %600 = vset.pattern.permute.xlu0 0
    %601 = vperm.xlu0 %600, %v527
    %v602 = vpop.permute.xlu0 %601
    %605 = vset.pattern.permute.xlu0 0
    %606 = vperm.xlu0 %605, %v528
    %v607 = vpop.permute.xlu0 %606
    %610 = vset.pattern.permute.xlu0 0
    %611 = vperm.xlu0 %610, %v529
    %v612 = vpop.permute.xlu0 %611
    %615 = vset.pattern.permute.xlu0 0
    %616 = vperm.xlu0 %615, %v530
    %v617 = vpop.permute.xlu0 %616
    %v619 = vadd.f32 %v595, %v602
    %v620 = vadd.f32 %v596, %v607
    %v621 = vadd.f32 %v597, %v612
    %v622 = vadd.f32 %v598, %v617
    %623 = vrot.lane.b32.xlu0 %v619, 16
    %v624 = vpop.permute.xlu0 %623
    %v625 = vsel %vm96, %v624, %v619
    %626 = vrot.lane.b32.xlu0 %v620, 16
    %v627 = vpop.permute.xlu0 %626
    %v628 = vsel %vm96, %v627, %v620
    %629 = vrot.lane.b32.xlu0 %v621, 16
    %v630 = vpop.permute.xlu0 %629
    %v631 = vsel %vm96, %v630, %v621
    %632 = vrot.lane.b32.xlu0 %v622, 16
    %v633 = vpop.permute.xlu0 %632
    %v634 = vsel %vm96, %v633, %v622
    %635 = vrot.lane.b32.xlu0 %v625, 16
    %v636 = vpop.permute.xlu0 %635
    %637 = vrot.lane.b32.xlu0 %v628, 16
    %v638 = vpop.permute.xlu0 %637
    %639 = vrot.lane.b32.xlu0 %v631, 16
    %v640 = vpop.permute.xlu0 %639
    %641 = vrot.lane.b32.xlu0 %v634, 16
    %v642 = vpop.permute.xlu0 %641
    %v643 = vsel %vm96, %v636, %v619
    %v644 = vsel %vm96, %v638, %v620
    %v645 = vsel %vm96, %v640, %v621
    %v646 = vsel %vm96, %v642, %v622
    %v647 = vmul.f32 %v643, %v129
    %v648 = vmul.f32 %v644, %v129
    %v649 = vmul.f32 %v645, %v129
    %v650 = vmul.f32 %v646, %v129
    %v651 = vld [vmem:[%s6] sm:$0xff]
    %v652 = vld [vmem:[%s6 + $0x8] sm:$0xff]
    %v653 = vld [vmem:[%s6 + $0x10] sm:$0xff]
    %v654 = vld [vmem:[%s6 + $0x18] sm:$0xff]
    %s655 = scalar_lea.vmem %s6, 32
    %v656 = vld [vmem:[%s655] sm:$0xff]
    %v657 = vld [vmem:[%s655 + $0x8] sm:$0xff]
    %v658 = vld [vmem:[%s655 + $0x10] sm:$0xff]
    %v659 = vld [vmem:[%s655 + $0x18] sm:$0xff]
    %v661 = vsel %vm144, %v656, 0
    %v664 = vsel %vm144, %v657, 0
    %v667 = vsel %vm144, %v658, 0
    %v670 = vsel %vm144, %v659, 0
    %672 = vmatprep.subr.mxu0 0.0
    %673 = vmatpush1.msra.mxu0 %v619
    %674 = vmatprep.subr.mxu0 0.0
    %675 = vmatpush1.msra.mxu0 %v620
    %676 = vmatprep.subr.mxu0 0.0
    %677 = vmatpush1.msra.mxu0 %v621
    %678 = vmatprep.subr.mxu0 0.0
    %679 = vmatpush1.msra.mxu0 %v622
    %680 = vmatprep.subr.mxu0 0.0
    %681 = vmatpush1.msra.mxu0 0.0
    %682 = vmatprep.subr.mxu0 0.0
    %683 = vmatpush1.msra.mxu0 0.0
    %684 = vmatprep.subr.mxu0 0.0
    %685 = vmatpush1.msra.mxu0 0.0
    %686 = vmatprep.subr.mxu0 0.0
    %687 = vmatpush1.msra.mxu0 0.0
    %688 = vmatprep.subr.mxu0 0.0
    %689 = vmatpush1.msra.mxu0 0.0
    %690 = vmatprep.subr.mxu0 0.0
    %691 = vmatpush1.msra.mxu0 0.0
    %692 = vmatprep.subr.mxu0 0.0
    %693 = vmatpush1.msra.mxu0 0.0
    %694 = vmatprep.subr.mxu0 0.0
    %695 = vmatpush1.msra.mxu0 0.0
    %696 = vmatprep.subr.mxu0 0.0
    %697 = vmatpush1.msra.mxu0 0.0
    %698 = vmatprep.subr.mxu0 0.0
    %699 = vmatpush1.msra.mxu0 0.0
    %700 = vmatprep.subr.mxu0 0.0
    %701 = vmatpush1.msra.mxu0 0.0
    %702 = vmatprep.subr.mxu0 0.0
    %703 = vmatpush1.msra.mxu0 0.0
    %704 = vmatprep.subr.mxu0 0.0
    %705 = vmatpush1.msra.mxu0 0.0
    %706 = vmatprep.subr.mxu0 0.0
    %707 = vmatpush1.msra.mxu0 0.0
    %708 = vmatprep.subr.mxu0 0.0
    %709 = vmatpush1.msra.mxu0 0.0
    %710 = vmatprep.subr.mxu0 0.0
    %711 = vmatpush1.msra.mxu0 0.0
    %712 = vmatprep.subr.mxu0 0.0
    %713 = vmatpush1.msra.mxu0 0.0
    %714 = vmatprep.subr.mxu0 0.0
    %715 = vmatpush1.msra.mxu0 0.0
    %716 = vmatprep.subr.mxu0 0.0
    %717 = vmatpush1.msra.mxu0 0.0
    %718 = vmatprep.subr.mxu0 0.0
    %719 = vmatpush1.msra.mxu0 0.0
    %720 = vmatprep.subr.mxu0 0.0
    %721 = vmatpush1.msra.mxu0 0.0
    %722 = vmatprep.subr.mxu0 0.0
    %723 = vmatpush1.msra.mxu0 0.0
    %724 = vmatprep.subr.mxu0 0.0
    %725 = vmatpush1.msra.mxu0 0.0
    %726 = vmatprep.subr.mxu0 0.0
    %727 = vmatpush1.msra.mxu0 0.0
    %728 = vmatprep.subr.mxu0 0.0
    %729 = vmatpush1.msra.mxu0 0.0
    %730 = vmatprep.subr.mxu0 0.0
    %731 = vmatpush1.msra.mxu0 0.0
    %732 = vmatprep.subr.mxu0 0.0
    %733 = vmatpush1.msra.mxu0 0.0
    %734 = vmatprep.subr.mxu0 0.0
    %735 = vmatpush1.msra.mxu0 0.0
    %736 = vmatprep.mubr.f32.mxu0 0.0
    %737 = vmatmul.mubr.f32.gmra.mrb[0].mxu0 %v661
    %v738 = vpop.f32.mrb[0].mxu0
    %v739 = vadd.f32 0.0, %v738
    %v740 = vpop.f32.mrb[0].mxu0
    %741 = vmatprep.mubr.f32.mxu0 0.0
    %742 = vmatmul.mubr.f32.gmra.mrb[0].mxu0 %v664
    %v743 = vpop.f32.mrb[0].mxu0
    %v744 = vadd.f32 0.0, %v743
    %v745 = vpop.f32.mrb[0].mxu0
    %746 = vmatprep.mubr.f32.mxu0 0.0
    %747 = vmatmul.mubr.f32.gmra.mrb[0].mxu0 %v667
    %v748 = vpop.f32.mrb[0].mxu0
    %v749 = vadd.f32 0.0, %v748
    %v750 = vpop.f32.mrb[0].mxu0
    %751 = vmatprep.mubr.f32.mxu0 0.0
    %752 = vmatmul.mubr.f32.gmra.mrb[0].mxu0 %v670
    %v753 = vpop.f32.mrb[0].mxu0
    %v754 = vadd.f32 0.0, %v753
    %v755 = vpop.f32.mrb[0].mxu0
    %756 = vdwg.mxu0
    %761 = vrot.lane.b32.xlu0 %v647, 113
    %v762 = vpop.permute.xlu0 %761
    %763 = vrot.lane.b32.xlu0 %v648, 113
    %v764 = vpop.permute.xlu0 %763
    %765 = vrot.lane.b32.xlu0 %v649, 113
    %v766 = vpop.permute.xlu0 %765
    %767 = vrot.lane.b32.xlu0 %v650, 113
    %v768 = vpop.permute.xlu0 %767
    %v774 = vsel %vm144, %v651, 0
    %v777 = vsel %vm144, %v652, 0
    %v780 = vsel %vm144, %v653, 0
    %v783 = vsel %vm144, %v654, 0
    %785 = vmatprep.subr.mxu0 0.0
    %786 = vmatpush1.msra.mxu0 %v762
    %787 = vmatprep.subr.mxu0 0.0
    %788 = vmatpush1.msra.mxu0 %v764
    %789 = vmatprep.subr.mxu0 0.0
    %790 = vmatpush1.msra.mxu0 %v766
    %791 = vmatprep.subr.mxu0 0.0
    %792 = vmatpush1.msra.mxu0 %v768
    %793 = vmatprep.subr.mxu0 0.0
    %794 = vmatpush1.msra.mxu0 0.0
    %795 = vmatprep.subr.mxu0 0.0
    %796 = vmatpush1.msra.mxu0 0.0
    %797 = vmatprep.subr.mxu0 0.0
    %798 = vmatpush1.msra.mxu0 0.0
    %799 = vmatprep.subr.mxu0 0.0
    %800 = vmatpush1.msra.mxu0 0.0
    %801 = vmatprep.subr.mxu0 0.0
    %802 = vmatpush1.msra.mxu0 0.0
    %803 = vmatprep.subr.mxu0 0.0
    %804 = vmatpush1.msra.mxu0 0.0
    %805 = vmatprep.subr.mxu0 0.0
    %806 = vmatpush1.msra.mxu0 0.0
    %807 = vmatprep.subr.mxu0 0.0
    %808 = vmatpush1.msra.mxu0 0.0
    %809 = vmatprep.subr.mxu0 0.0
    %810 = vmatpush1.msra.mxu0 0.0
    %811 = vmatprep.subr.mxu0 0.0
    %812 = vmatpush1.msra.mxu0 0.0
    %813 = vmatprep.subr.mxu0 0.0
    %814 = vmatpush1.msra.mxu0 0.0
    %815 = vmatprep.subr.mxu0 0.0
    %816 = vmatpush1.msra.mxu0 0.0
    %817 = vmatprep.subr.mxu0 0.0
    %818 = vmatpush1.msra.mxu0 0.0
    %819 = vmatprep.subr.mxu0 0.0
    %820 = vmatpush1.msra.mxu0 0.0
    %821 = vmatprep.subr.mxu0 0.0
    %822 = vmatpush1.msra.mxu0 0.0
    %823 = vmatprep.subr.mxu0 0.0
    %824 = vmatpush1.msra.mxu0 0.0
    %825 = vmatprep.subr.mxu0 0.0
    %826 = vmatpush1.msra.mxu0 0.0
    %827 = vmatprep.subr.mxu0 0.0
    %828 = vmatpush1.msra.mxu0 0.0
    %829 = vmatprep.subr.mxu0 0.0
    %830 = vmatpush1.msra.mxu0 0.0
    %831 = vmatprep.subr.mxu0 0.0
    %832 = vmatpush1.msra.mxu0 0.0
    %833 = vmatprep.subr.mxu0 0.0
    %834 = vmatpush1.msra.mxu0 0.0
    %835 = vmatprep.subr.mxu0 0.0
    %836 = vmatpush1.msra.mxu0 0.0
    %837 = vmatprep.subr.mxu0 0.0
    %838 = vmatpush1.msra.mxu0 0.0
    %839 = vmatprep.subr.mxu0 0.0
    %840 = vmatpush1.msra.mxu0 0.0
    %841 = vmatprep.subr.mxu0 0.0
    %842 = vmatpush1.msra.mxu0 0.0
    %843 = vmatprep.subr.mxu0 0.0
    %844 = vmatpush1.msra.mxu0 0.0
    %845 = vmatprep.subr.mxu0 0.0
    %846 = vmatpush1.msra.mxu0 0.0
    %847 = vmatprep.subr.mxu0 0.0
    %848 = vmatpush1.msra.mxu0 0.0
    %849 = vmatprep.mubr.f32.mxu0 0.0
    %850 = vmatmul.mubr.f32.gmra.mrb[0].mxu0 %v774
    %v851 = vpop.f32.mrb[0].mxu0
    %v852 = vadd.f32 %v739, %v851
    %v853 = vpop.f32.mrb[0].mxu0
    %854 = vmatprep.mubr.f32.mxu0 0.0
    %855 = vmatmul.mubr.f32.gmra.mrb[0].mxu0 %v777
    %v856 = vpop.f32.mrb[0].mxu0
    %v857 = vadd.f32 %v744, %v856
    %v858 = vpop.f32.mrb[0].mxu0
    %859 = vmatprep.mubr.f32.mxu0 0.0
    %860 = vmatmul.mubr.f32.gmra.mrb[0].mxu0 %v780
    %v861 = vpop.f32.mrb[0].mxu0
    %v862 = vadd.f32 %v749, %v861
    %v863 = vpop.f32.mrb[0].mxu0
    %864 = vmatprep.mubr.f32.mxu0 0.0
    %865 = vmatmul.mubr.f32.gmra.mrb[0].mxu0 %v783
    %v866 = vpop.f32.mrb[0].mxu0
    %v867 = vadd.f32 %v754, %v866
    %v868 = vpop.f32.mrb[0].mxu0
    %869 = vdwg.mxu0
    %v870 = vmul.f32 %v643, %v363
    %v871 = vmul.f32 %v644, %v363
    %v872 = vmul.f32 %v645, %v363
    %v873 = vmul.f32 %v646, %v363
    %s874 = scalar_lea.vmem %s6, 64
    %v875 = vld [vmem:[%s874] sm:$0xff]
    %v876 = vld [vmem:[%s874 + $0x8] sm:$0xff]
    %v877 = vld [vmem:[%s874 + $0x10] sm:$0xff]
    %v878 = vld [vmem:[%s874 + $0x18] sm:$0xff]
    %883 = vrot.lane.b32.xlu0 %v870, 127
    %v884 = vpop.permute.xlu0 %883
    %885 = vrot.lane.b32.xlu0 %v871, 127
    %v886 = vpop.permute.xlu0 %885
    %887 = vrot.lane.b32.xlu0 %v872, 127
    %v888 = vpop.permute.xlu0 %887
    %889 = vrot.lane.b32.xlu0 %v873, 127
    %v890 = vpop.permute.xlu0 %889
    %v896 = vsel %vm144, %v875, 0
    %v899 = vsel %vm144, %v876, 0
    %v902 = vsel %vm144, %v877, 0
    %v905 = vsel %vm144, %v878, 0
    %907 = vmatprep.subr.mxu0 0.0
    %908 = vmatpush1.msra.mxu0 %v884
    %909 = vmatprep.subr.mxu0 0.0
    %910 = vmatpush1.msra.mxu0 %v886
    %911 = vmatprep.subr.mxu0 0.0
    %912 = vmatpush1.msra.mxu0 %v888
    %913 = vmatprep.subr.mxu0 0.0
    %914 = vmatpush1.msra.mxu0 %v890
    %915 = vmatprep.subr.mxu0 0.0
    %916 = vmatpush1.msra.mxu0 0.0
    %917 = vmatprep.subr.mxu0 0.0
    %918 = vmatpush1.msra.mxu0 0.0
    %919 = vmatprep.subr.mxu0 0.0
    %920 = vmatpush1.msra.mxu0 0.0
    %921 = vmatprep.subr.mxu0 0.0
    %922 = vmatpush1.msra.mxu0 0.0
    %923 = vmatprep.subr.mxu0 0.0
    %924 = vmatpush1.msra.mxu0 0.0
    %925 = vmatprep.subr.mxu0 0.0
    %926 = vmatpush1.msra.mxu0 0.0
    %927 = vmatprep.subr.mxu0 0.0
    %928 = vmatpush1.msra.mxu0 0.0
    %929 = vmatprep.subr.mxu0 0.0
    %930 = vmatpush1.msra.mxu0 0.0
    %931 = vmatprep.subr.mxu0 0.0
    %932 = vmatpush1.msra.mxu0 0.0
    %933 = vmatprep.subr.mxu0 0.0
    %934 = vmatpush1.msra.mxu0 0.0
    %935 = vmatprep.subr.mxu0 0.0
    %936 = vmatpush1.msra.mxu0 0.0
    %937 = vmatprep.subr.mxu0 0.0
    %938 = vmatpush1.msra.mxu0 0.0
    %939 = vmatprep.subr.mxu0 0.0
    %940 = vmatpush1.msra.mxu0 0.0
    %941 = vmatprep.subr.mxu0 0.0
    %942 = vmatpush1.msra.mxu0 0.0
    %943 = vmatprep.subr.mxu0 0.0
    %944 = vmatpush1.msra.mxu0 0.0
    %945 = vmatprep.subr.mxu0 0.0
    %946 = vmatpush1.msra.mxu0 0.0
    %947 = vmatprep.subr.mxu0 0.0
    %948 = vmatpush1.msra.mxu0 0.0
    %949 = vmatprep.subr.mxu0 0.0
    %950 = vmatpush1.msra.mxu0 0.0
    %951 = vmatprep.subr.mxu0 0.0
    %952 = vmatpush1.msra.mxu0 0.0
    %953 = vmatprep.subr.mxu0 0.0
    %954 = vmatpush1.msra.mxu0 0.0
    %955 = vmatprep.subr.mxu0 0.0
    %956 = vmatpush1.msra.mxu0 0.0
    %957 = vmatprep.subr.mxu0 0.0
    %958 = vmatpush1.msra.mxu0 0.0
    %959 = vmatprep.subr.mxu0 0.0
    %960 = vmatpush1.msra.mxu0 0.0
    %961 = vmatprep.subr.mxu0 0.0
    %962 = vmatpush1.msra.mxu0 0.0
    %963 = vmatprep.subr.mxu0 0.0
    %964 = vmatpush1.msra.mxu0 0.0
    %965 = vmatprep.subr.mxu0 0.0
    %966 = vmatpush1.msra.mxu0 0.0
    %967 = vmatprep.subr.mxu0 0.0
    %968 = vmatpush1.msra.mxu0 0.0
    %969 = vmatprep.subr.mxu0 0.0
    %970 = vmatpush1.msra.mxu0 0.0
    %971 = vmatprep.mubr.f32.mxu0 0.0
    %972 = vmatmul.mubr.f32.gmra.mrb[0].mxu0 %v896
    %v973 = vpop.f32.mrb[0].mxu0
    %v974 = vadd.f32 0.0, %v973
    %v975 = vpop.f32.mrb[0].mxu0
    %976 = vmatprep.mubr.f32.mxu0 0.0
    %977 = vmatmul.mubr.f32.gmra.mrb[0].mxu0 %v899
    %v978 = vpop.f32.mrb[0].mxu0
    %v979 = vadd.f32 0.0, %v978
    %v980 = vpop.f32.mrb[0].mxu0
    %981 = vmatprep.mubr.f32.mxu0 0.0
    %982 = vmatmul.mubr.f32.gmra.mrb[0].mxu0 %v902
    %v983 = vpop.f32.mrb[0].mxu0
    %v984 = vadd.f32 0.0, %v983
    %v985 = vpop.f32.mrb[0].mxu0
    %986 = vmatprep.mubr.f32.mxu0 0.0
    %987 = vmatmul.mubr.f32.gmra.mrb[0].mxu0 %v905
    %v988 = vpop.f32.mrb[0].mxu0
    %v989 = vadd.f32 0.0, %v988
    %v990 = vpop.f32.mrb[0].mxu0
    %991 = vdwg.mxu0
    %v992 = vadd.f32 %v852, %v974
    %v993 = vadd.f32 %v857, %v979
    %v994 = vadd.f32 %v862, %v984
    %v995 = vadd.f32 %v867, %v989
    %v996 = vld [vmem:[%s7] sm:$0xff]
    %v997 = vld [vmem:[%s7 + $0x8] sm:$0xff]
    %v998 = vld [vmem:[%s7 + $0x10] sm:$0xff]
    %v999 = vld [vmem:[%s7 + $0x18] sm:$0xff]
    %1001 = vset.pattern.permute.xlu0 0
    %1002 = vperm.xlu0 %1001, %v996
    %v1003 = vpop.permute.xlu0 %1002
    %1006 = vset.pattern.permute.xlu0 0
    %1007 = vperm.xlu0 %1006, %v997
    %v1008 = vpop.permute.xlu0 %1007
    %1011 = vset.pattern.permute.xlu0 0
    %1012 = vperm.xlu0 %1011, %v998
    %v1013 = vpop.permute.xlu0 %1012
    %1016 = vset.pattern.permute.xlu0 0
    %1017 = vperm.xlu0 %1016, %v999
    %v1018 = vpop.permute.xlu0 %1017
    %v1020 = vadd.f32 %v992, %v1003
    %v1021 = vadd.f32 %v993, %v1008
    %v1022 = vadd.f32 %v994, %v1013
    %v1023 = vadd.f32 %v995, %v1018
    %v1024 = vmax.f32 %v1020, 0.0
    %v1025 = vmax.f32 %v1021, 0.0
    %v1026 = vmax.f32 %v1022, 0.0
    %v1027 = vmax.f32 %v1023, 0.0
    %v1028 = vld [vmem:[%s8] sm:$0xff]
    %v1029 = vld [vmem:[%s8 + $0x8] sm:$0xff]
    %v1030 = vld [vmem:[%s8 + $0x10] sm:$0xff]
    %v1031 = vld [vmem:[%s8 + $0x18] sm:$0xff]
    %v1032 = vld [vmem:[%s9] sm:$0xff]
    %v1033 = vld [vmem:[%s9 + $0x8] sm:$0xff]
    %v1034 = vld [vmem:[%s9 + $0x10] sm:$0xff]
    %v1035 = vld [vmem:[%s9 + $0x18] sm:$0xff]
    %v1036 = vsel %vm531, %v1024, 0.0
    %v1037 = vsel %vm531, %v1025, 0.0
    %v1038 = vadd.f32 %v1036, %v1037
    %v1039 = vsel %vm531, %v1026, 0.0
    %v1040 = vadd.f32 %v1038, %v1039
    %v1041 = vsel %vm531, %v1027, 0.0
    %v1042 = vadd.f32 %v1040, %v1041
    %v1043 = vrot.slane %v1042, 4
    %v1044 = vadd.f32 %v1042, %v1043
    %v1045 = vrot.slane %v1044, 2
    %v1046 = vadd.f32 %v1044, %v1045
    %v1047 = vrot.slane %v1046, 1
    %v1048 = vadd.f32 %v1046, %v1047
    %v1049 = vmul.f32 %v1048, %v545
    %v1050 = vsub.f32 %v1024, %v1049
    %v1051 = vsub.f32 %v1025, %v1049
    %v1052 = vsub.f32 %v1026, %v1049
    %v1053 = vsub.f32 %v1027, %v1049
    %v1054 = vmul.f32 %v1050, %v1050
    %v1055 = vmul.f32 %v1051, %v1051
    %v1056 = vmul.f32 %v1052, %v1052
    %v1057 = vmul.f32 %v1053, %v1053
    %v1058 = vsel %vm531, %v1054, 0.0
    %v1059 = vsel %vm531, %v1055, 0.0
    %v1060 = vadd.f32 %v1058, %v1059
    %v1061 = vsel %vm531, %v1056, 0.0
    %v1062 = vadd.f32 %v1060, %v1061
    %v1063 = vsel %vm531, %v1057, 0.0
    %v1064 = vadd.f32 %v1062, %v1063
    %v1065 = vrot.slane %v1064, 4
    %v1066 = vadd.f32 %v1064, %v1065
    %v1067 = vrot.slane %v1066, 2
    %v1068 = vadd.f32 %v1066, %v1067
    %v1069 = vrot.slane %v1068, 1
    %v1070 = vadd.f32 %v1068, %v1069
    %v1071 = vmul.f32 %v1070, %v545
    %v1072 = vadd.f32 %v1071, 1e-05
    %v1073 = vrsqrt.pop %v1072
    %v1074 = vmul.f32 %v1050, %v1073
    %v1075 = vmul.f32 %v1051, %v1073
    %v1076 = vmul.f32 %v1052, %v1073
    %v1077 = vmul.f32 %v1053, %v1073
    %1079 = vset.pattern.permute.xlu0 0
    %1080 = vperm.xlu0 %1079, %v1028
    %v1081 = vpop.permute.xlu0 %1080
    %1084 = vset.pattern.permute.xlu0 0
    %1085 = vperm.xlu0 %1084, %v1029
    %v1086 = vpop.permute.xlu0 %1085
    %1089 = vset.pattern.permute.xlu0 0
    %1090 = vperm.xlu0 %1089, %v1030
    %v1091 = vpop.permute.xlu0 %1090
    %1094 = vset.pattern.permute.xlu0 0
    %1095 = vperm.xlu0 %1094, %v1031
    %v1096 = vpop.permute.xlu0 %1095
    %v1098 = vmul.f32 %v1074, %v1081
    %v1099 = vmul.f32 %v1075, %v1086
    %v1100 = vmul.f32 %v1076, %v1091
    %v1101 = vmul.f32 %v1077, %v1096
    %1103 = vset.pattern.permute.xlu0 0
    %1104 = vperm.xlu0 %1103, %v1032
    %v1105 = vpop.permute.xlu0 %1104
    %1108 = vset.pattern.permute.xlu0 0
    %1109 = vperm.xlu0 %1108, %v1033
    %v1110 = vpop.permute.xlu0 %1109
    %1113 = vset.pattern.permute.xlu0 0
    %1114 = vperm.xlu0 %1113, %v1034
    %v1115 = vpop.permute.xlu0 %1114
    %1118 = vset.pattern.permute.xlu0 0
    %1119 = vperm.xlu0 %1118, %v1035
    %v1120 = vpop.permute.xlu0 %1119
    %v1122 = vadd.f32 %v1098, %v1105
    %v1123 = vadd.f32 %v1099, %v1110
    %v1124 = vadd.f32 %v1100, %v1115
    %v1125 = vadd.f32 %v1101, %v1120
    %v1126 = vld [vmem:[%s10] sm:$0xff]
    %v1127 = vld [vmem:[%s10 + $0x8] sm:$0xff]
    %v1128 = vld [vmem:[%s10 + $0x10] sm:$0xff]
    %v1129 = vld [vmem:[%s10 + $0x18] sm:$0xff]
    %1131 = vset.pattern.permute.xlu0 0
    %1132 = vperm.xlu0 %1131, %v1126
    %v1133 = vpop.permute.xlu0 %1132
    %1136 = vset.pattern.permute.xlu0 0
    %1137 = vperm.xlu0 %1136, %v1127
    %v1138 = vpop.permute.xlu0 %1137
    %1141 = vset.pattern.permute.xlu0 0
    %1142 = vperm.xlu0 %1141, %v1128
    %v1143 = vpop.permute.xlu0 %1142
    %1146 = vset.pattern.permute.xlu0 0
    %1147 = vperm.xlu0 %1146, %v1129
    %v1148 = vpop.permute.xlu0 %1147
    %v1150 = vmul.f32 %v1122, %v1133
    %v1151 = vmul.f32 %v1123, %v1138
    %v1152 = vmul.f32 %v1124, %v1143
    %v1153 = vmul.f32 %v1125, %v1148
    %v1154 = vsel %vm531, %v1150, 0.0
    %v1155 = vsel %vm531, %v1151, 0.0
    %v1156 = vadd.f32 %v1154, %v1155
    %v1157 = vsel %vm531, %v1152, 0.0
    %v1158 = vadd.f32 %v1156, %v1157
    %v1159 = vsel %vm531, %v1153, 0.0
    %v1160 = vadd.f32 %v1158, %v1159
    %v1161 = vrot.slane %v1160, 4
    %v1162 = vadd.f32 %v1160, %v1161
    %v1163 = vrot.slane %v1162, 2
    %v1164 = vadd.f32 %v1162, %v1163
    %v1165 = vrot.slane %v1164, 1
    %v1166 = vadd.f32 %v1164, %v1165
    %v1167 = vld [vmem:[#allocation2] sm:$0x1]
    %1169 = vset.pattern.permute.xlu0 0
    %1170 = vperm.xlu0 %1169, %v1167
    %v1171 = vpop.permute.xlu0 %1170
    %v1173 = vlaneseq
    %v1174 = vshrl.u32 %v1173, 7
    %v1175 = vsub.s32 0, %v1174
    %v1176 = vrot.slane %v1171, %v1175
    %v1177 = vadd.f32 %v1166, %v1176
    %v1178 = vld [vmem:[%s1] sm:$0x1]
    %vm1179 = vcmp.gt.f32.partialorder %v1178, 0.5
    %v1180 = vsel %vm1179, 0.0, %v1177
    %vm1181 = vcmask 122880
    %1182 = vst.msk [vmem:[#allocation3] sm:$0x1] %vm1181, %v1180
    %v1183 = vmul.f32 %v1180, 1.442695
    %v1184 = vpow.pop %v1183
    %v1185 = vsub.f32 %v1184, 1.0
    %v1186 = vround.ne.pseudo %v1185
    %v1187 = vmax.f32 %v1186, 0.0
    %1188 = vst.msk [vmem:[#allocation5] sm:$0x1] %vm1181, %v1187
    %v1189 = vfloor.f32 %v1187
    %v1190 = vmin.f32 %v1189, 48.0
    %1191 = vrot.lane.b32.xlu0 %v1190, 16
    %v1192 = vpop.permute.xlu0 %1191
    %v1193 = vsel %vm96, %v1192, %v1190
    %1194 = vrot.lane.b32.xlu0 %v1193, 16
    %v1195 = vpop.permute.xlu0 %1194
    %v1196 = vsel %vm96, %v1195, %v1190
    %vm1197 = vcmp.ge.s32.totalorder %v95, 1
    %v1198 = vsel %vm1197, 1, 0
    %v1199 = vcvt.s32.f32 %v1198
    %1201 = vrot.lane.b32.xlu0 %v1199, 15
    %v1202 = vpop.permute.xlu0 %1201
    %v1204 = vmul.f32 %v1196, %v1202
    %v1207 = vunpack.c.l.s4 1966171168
    %v1208 = vunpack.c.0.s8 %v1207
    %v1209 = vlaneseq
    %v1210 = vshrl.u32 %v1209, 7
    %v1211 = vsub.s32 %v1208, %v1210
    %v1212 = vrot.slane %v1204, %v1211
    %v1214 = vunpack.c.l.s4 1966171168
    %v1215 = vunpack.c.0.s8 %v1214
    %v1216 = vlaneseq
    %v1217 = vshrl.u32 %v1216, 7
    %v1218 = vsub.s32 %v1215, %v1217
    %v1219 = vrot.slane %v1212, %v1218
    %1220 = vrot.lane.b32.xlu0 %v1219, 113
    %v1221 = vpop.permute.xlu0 %1220
    %v1223 = vadd.f32 %v1190, %v1221
    %1224 = vrot.lane.b32.xlu0 %v1223, 16
    %v1225 = vpop.permute.xlu0 %1224
    %v1226 = vsel %vm96, %v1225, %v1223
    %1227 = vrot.lane.b32.xlu0 %v1226, 16
    %v1228 = vpop.permute.xlu0 %1227
    %v1229 = vsel %vm96, %v1228, %v1223
    %vm1230 = vcmp.ge.s32.totalorder %v95, 2
    %v1231 = vsel %vm1230, 1, 0
    %v1232 = vcvt.s32.f32 %v1231
    %1234 = vrot.lane.b32.xlu0 %v1232, 14
    %v1235 = vpop.permute.xlu0 %1234
    %v1237 = vmul.f32 %v1229, %v1235
    %v1240 = vunpack.c.l.s4 1966171168
    %v1241 = vunpack.c.0.s8 %v1240
    %v1242 = vlaneseq
    %v1243 = vshrl.u32 %v1242, 7
    %v1244 = vsub.s32 %v1241, %v1243
    %v1245 = vrot.slane %v1237, %v1244
    %v1247 = vunpack.c.l.s4 1966171168
    %v1248 = vunpack.c.0.s8 %v1247
    %v1249 = vlaneseq
    %v1250 = vshrl.u32 %v1249, 7
    %v1251 = vsub.s32 %v1248, %v1250
    %v1252 = vrot.slane %v1245, %v1251
    %1253 = vrot.lane.b32.xlu0 %v1252, 114
    %v1254 = vpop.permute.xlu0 %1253
    %v1256 = vadd.f32 %v1223, %v1254
    %1257 = vrot.lane.b32.xlu0 %v1256, 16
    %v1258 = vpop.permute.xlu0 %1257
    %v1259 = vsel %vm96, %v1258, %v1256
    %1260 = vrot.lane.b32.xlu0 %v1259, 16
    %v1261 = vpop.permute.xlu0 %1260
    %v1262 = vsel %vm96, %v1261, %v1256
    %vm1263 = vcmp.ge.s32.totalorder %v95, 4
    %v1264 = vsel %vm1263, 1, 0
    %v1265 = vcvt.s32.f32 %v1264
    %1267 = vrot.lane.b32.xlu0 %v1265, 12
    %v1268 = vpop.permute.xlu0 %1267
    %v1270 = vmul.f32 %v1262, %v1268
    %v1273 = vunpack.c.l.s4 1966171168
    %v1274 = vunpack.c.0.s8 %v1273
    %v1275 = vlaneseq
    %v1276 = vshrl.u32 %v1275, 7
    %v1277 = vsub.s32 %v1274, %v1276
    %v1278 = vrot.slane %v1270, %v1277
    %v1280 = vunpack.c.l.s4 1966171168
    %v1281 = vunpack.c.0.s8 %v1280
    %v1282 = vlaneseq
    %v1283 = vshrl.u32 %v1282, 7
    %v1284 = vsub.s32 %v1281, %v1283
    %v1285 = vrot.slane %v1278, %v1284
    %1286 = vrot.lane.b32.xlu0 %v1285, 116
    %v1287 = vpop.permute.xlu0 %1286
    %v1289 = vadd.f32 %v1256, %v1287
    %v1290 = vsub.f32 %v1289, %v1190
    %v1291 = vlaneseq
    %v1292 = vshrl.u32 %v1291, 7
    %v1293 = vadd.s32 %v1292, 8
    %v1294 = vadd.s32 %v1292, 16
    %v1295 = vadd.s32 %v1292, 24
    %v1296 = vadd.s32 %v1292, 32
    %v1297 = vadd.s32 %v1292, 40
    %v1298 = vcvt.s32.f32 %v1292
    %v1299 = vcvt.s32.f32 %v1293
    %v1300 = vcvt.s32.f32 %v1294
    %v1301 = vcvt.s32.f32 %v1295
    %v1302 = vcvt.s32.f32 %v1296
    %v1303 = vcvt.s32.f32 %v1297
    %v1305 = vlaneseq
    %v1306 = vshrl.u32 %v1305, 7
    %v1307 = vsub.s32 0, %v1306
    %v1308 = vrot.slane %v1290, %v1307
    %vm1310 = vcmp.ge.f32.partialorder %v1298, %v1308
    %vm1311 = vcmp.ge.f32.partialorder %v1299, %v1308
    %vm1312 = vcmp.ge.f32.partialorder %v1300, %v1308
    %vm1313 = vcmp.ge.f32.partialorder %v1301, %v1308
    %vm1314 = vcmp.ge.f32.partialorder %v1302, %v1308
    %vm1315 = vcmp.ge.f32.partialorder %v1303, %v1308
    %v1317 = vlaneseq
    %v1318 = vshrl.u32 %v1317, 7
    %v1319 = vsub.s32 0, %v1318
    %v1320 = vrot.slane %v1289, %v1319
    %vm1322 = vcmp.lt.f32.partialorder %v1298, %v1320
    %vm1323 = vcmp.lt.f32.partialorder %v1299, %v1320
    %vm1324 = vcmp.lt.f32.partialorder %v1300, %v1320
    %vm1325 = vcmp.lt.f32.partialorder %v1301, %v1320
    %vm1326 = vcmp.lt.f32.partialorder %v1302, %v1320
    %vm1327 = vcmp.lt.f32.partialorder %v1303, %v1320
    %vm1328 = vmand %vm1310, %vm1322
    %vm1329 = vmand %vm1311, %vm1323
    %vm1330 = vmand %vm1312, %vm1324
    %vm1331 = vmand %vm1313, %vm1325
    %vm1332 = vmand %vm1314, %vm1326
    %vm1333 = vmand %vm1315, %vm1327
    %v1334 = vsel %vm1328, 1, 0
    %v1335 = vsel %vm1329, 1, 0
    %v1336 = vsel %vm1330, 1, 0
    %v1337 = vsel %vm1331, 1, 0
    %v1338 = vsel %vm1332, 1, 0
    %v1339 = vsel %vm1333, 1, 0
    %v1340 = vcvt.s32.f32 %v1334
    %v1341 = vcvt.s32.f32 %v1335
    %v1342 = vcvt.s32.f32 %v1336
    %v1343 = vcvt.s32.f32 %v1337
    %v1344 = vcvt.s32.f32 %v1338
    %v1345 = vcvt.s32.f32 %v1339
    %vm1346 = vcmask 64512
    %v1348 = vsel %vm1346, %v1340, 0
    %v1351 = vsel %vm1346, %v1341, 0
    %v1354 = vsel %vm1346, %v1342, 0
    %v1357 = vsel %vm1346, %v1343, 0
    %v1360 = vsel %vm1346, %v1344, 0
    %v1363 = vsel %vm1346, %v1345, 0
    %1365 = vmatprep.subr.mxu0 0.0
    %1366 = vmatpush1.msra.mxu0 %v48
    %1367 = vmatprep.subr.mxu0 0.0
    %1368 = vmatpush1.msra.mxu0 0.0
    %1369 = vmatprep.subr.mxu0 0.0
    %1370 = vmatpush1.msra.mxu0 0.0
    %1371 = vmatprep.subr.mxu0 0.0
    %1372 = vmatpush1.msra.mxu0 0.0
    %1373 = vmatprep.subr.mxu0 0.0
    %1374 = vmatpush1.msra.mxu0 0.0
    %1375 = vmatprep.subr.mxu0 0.0
    %1376 = vmatpush1.msra.mxu0 0.0
    %1377 = vmatprep.subr.mxu0 0.0
    %1378 = vmatpush1.msra.mxu0 0.0
    %1379 = vmatprep.subr.mxu0 0.0
    %1380 = vmatpush1.msra.mxu0 0.0
    %1381 = vmatprep.subr.mxu0 0.0
    %1382 = vmatpush1.msra.mxu0 0.0
    %1383 = vmatprep.subr.mxu0 0.0
    %1384 = vmatpush1.msra.mxu0 0.0
    %1385 = vmatprep.subr.mxu0 0.0
    %1386 = vmatpush1.msra.mxu0 0.0
    %1387 = vmatprep.subr.mxu0 0.0
    %1388 = vmatpush1.msra.mxu0 0.0
    %1389 = vmatprep.subr.mxu0 0.0
    %1390 = vmatpush1.msra.mxu0 0.0
    %1391 = vmatprep.subr.mxu0 0.0
    %1392 = vmatpush1.msra.mxu0 0.0
    %1393 = vmatprep.subr.mxu0 0.0
    %1394 = vmatpush1.msra.mxu0 0.0
    %1395 = vmatprep.subr.mxu0 0.0
    %1396 = vmatpush1.msra.mxu0 0.0
    %1397 = vmatprep.subr.mxu0 0.0
    %1398 = vmatpush1.msra.mxu0 0.0
    %1399 = vmatprep.subr.mxu0 0.0
    %1400 = vmatpush1.msra.mxu0 0.0
    %1401 = vmatprep.subr.mxu0 0.0
    %1402 = vmatpush1.msra.mxu0 0.0
    %1403 = vmatprep.subr.mxu0 0.0
    %1404 = vmatpush1.msra.mxu0 0.0
    %1405 = vmatprep.subr.mxu0 0.0
    %1406 = vmatpush1.msra.mxu0 0.0
    %1407 = vmatprep.subr.mxu0 0.0
    %1408 = vmatpush1.msra.mxu0 0.0
    %1409 = vmatprep.subr.mxu0 0.0
    %1410 = vmatpush1.msra.mxu0 0.0
    %1411 = vmatprep.subr.mxu0 0.0
    %1412 = vmatpush1.msra.mxu0 0.0
    %1413 = vmatprep.subr.mxu0 0.0
    %1414 = vmatpush1.msra.mxu0 0.0
    %1415 = vmatprep.subr.mxu0 0.0
    %1416 = vmatpush1.msra.mxu0 0.0
    %1417 = vmatprep.subr.mxu0 0.0
    %1418 = vmatpush1.msra.mxu0 0.0
    %1419 = vmatprep.subr.mxu0 0.0
    %1420 = vmatpush1.msra.mxu0 0.0
    %1421 = vmatprep.subr.mxu0 0.0
    %1422 = vmatpush1.msra.mxu0 0.0
    %1423 = vmatprep.subr.mxu0 0.0
    %1424 = vmatpush1.msra.mxu0 0.0
    %1425 = vmatprep.subr.mxu0 0.0
    %1426 = vmatpush1.msra.mxu0 0.0
    %1427 = vmatprep.subr.mxu0 0.0
    %1428 = vmatpush1.msra.mxu0 0.0
    %1429 = vmatprep.mubr.f32.mxu0 0.0
    %1430 = vmatmul.mubr.f32.gmra.mrb[0].mxu0 %v1348
    %v1431 = vpop.f32.mrb[0].mxu0
    %v1432 = vadd.f32 0.0, %v1431
    %v1433 = vpop.f32.mrb[0].mxu0
    %1434 = vmatprep.mubr.f32.mxu0 0.0
    %1435 = vmatmul.mubr.f32.gmra.mrb[0].mxu0 %v1351
    %v1436 = vpop.f32.mrb[0].mxu0
    %v1437 = vadd.f32 0.0, %v1436
    %v1438 = vpop.f32.mrb[0].mxu0
    %1439 = vmatprep.mubr.f32.mxu0 0.0
    %1440 = vmatmul.mubr.f32.gmra.mrb[0].mxu0 %v1354
    %v1441 = vpop.f32.mrb[0].mxu0
    %v1442 = vadd.f32 0.0, %v1441
    %v1443 = vpop.f32.mrb[0].mxu0
    %1444 = vmatprep.mubr.f32.mxu0 0.0
    %1445 = vmatmul.mubr.f32.gmra.mrb[0].mxu0 %v1357
    %v1446 = vpop.f32.mrb[0].mxu0
    %v1447 = vadd.f32 0.0, %v1446
    %v1448 = vpop.f32.mrb[0].mxu0
    %1449 = vmatprep.mubr.f32.mxu0 0.0
    %1450 = vmatmul.mubr.f32.gmra.mrb[0].mxu0 %v1360
    %v1451 = vpop.f32.mrb[0].mxu0
    %v1452 = vadd.f32 0.0, %v1451
    %v1453 = vpop.f32.mrb[0].mxu0
    %1454 = vmatprep.mubr.f32.mxu0 0.0
    %1455 = vmatmul.mubr.f32.gmra.mrb[0].mxu0 %v1363
    %v1456 = vpop.f32.mrb[0].mxu0
    %v1457 = vadd.f32 0.0, %v1456
    %v1458 = vpop.f32.mrb[0].mxu0
    %1459 = vdwg.mxu0
    %1460 = vst.msk [vmem:[%s14] sm:$0xff] %vm144, %v1432
    %1461 = vst.msk [vmem:[%s14 + $0x8] sm:$0xff] %vm144, %v1437
    %1462 = vst.msk [vmem:[%s14 + $0x10] sm:$0xff] %vm144, %v1442
    %1463 = vst.msk [vmem:[%s14 + $0x18] sm:$0xff] %vm144, %v1447
    %1464 = vst.msk [vmem:[%s14 + $0x20] sm:$0xff] %vm144, %v1452
    %1465 = vst.msk [vmem:[%s14 + $0x28] sm:$0xff] %vm144, %v1457
    %1466 = vrot.lane.b32.xlu0 %v1340, 120
    %v1467 = vpop.permute.xlu0 %1466
    %1468 = vrot.lane.b32.xlu0 %v1341, 120
    %v1469 = vpop.permute.xlu0 %1468
    %1470 = vrot.lane.b32.xlu0 %v1342, 120
    %v1471 = vpop.permute.xlu0 %1470
    %1472 = vrot.lane.b32.xlu0 %v1343, 120
    %v1473 = vpop.permute.xlu0 %1472
    %1474 = vrot.lane.b32.xlu0 %v1344, 120
    %v1475 = vpop.permute.xlu0 %1474
    %1476 = vrot.lane.b32.xlu0 %v1345, 120
    %v1477 = vpop.permute.xlu0 %1476
    %v1478 = vsel %vm1346, %v1467, 0
    %v1480 = vsel %vm1346, %v1469, 0
    %v1482 = vsel %vm1346, %v1471, 0
    %v1484 = vsel %vm1346, %v1473, 0
    %v1486 = vsel %vm1346, %v1475, 0
    %v1488 = vsel %vm1346, %v1477, 0
    %1490 = vmatprep.subr.mxu0 0.0
    %1491 = vmatpush1.msra.mxu0 %v49
    %1492 = vmatprep.subr.mxu0 0.0
    %1493 = vmatpush1.msra.mxu0 0.0
    %1494 = vmatprep.subr.mxu0 0.0
    %1495 = vmatpush1.msra.mxu0 0.0
    %1496 = vmatprep.subr.mxu0 0.0
    %1497 = vmatpush1.msra.mxu0 0.0
    %1498 = vmatprep.subr.mxu0 0.0
    %1499 = vmatpush1.msra.mxu0 0.0
    %1500 = vmatprep.subr.mxu0 0.0
    %1501 = vmatpush1.msra.mxu0 0.0
    %1502 = vmatprep.subr.mxu0 0.0
    %1503 = vmatpush1.msra.mxu0 0.0
    %1504 = vmatprep.subr.mxu0 0.0
    %1505 = vmatpush1.msra.mxu0 0.0
    %1506 = vmatprep.subr.mxu0 0.0
    %1507 = vmatpush1.msra.mxu0 0.0
    %1508 = vmatprep.subr.mxu0 0.0
    %1509 = vmatpush1.msra.mxu0 0.0
    %1510 = vmatprep.subr.mxu0 0.0
    %1511 = vmatpush1.msra.mxu0 0.0
    %1512 = vmatprep.subr.mxu0 0.0
    %1513 = vmatpush1.msra.mxu0 0.0
    %1514 = vmatprep.subr.mxu0 0.0
    %1515 = vmatpush1.msra.mxu0 0.0
    %1516 = vmatprep.subr.mxu0 0.0
    %1517 = vmatpush1.msra.mxu0 0.0
    %1518 = vmatprep.subr.mxu0 0.0
    %1519 = vmatpush1.msra.mxu0 0.0
    %1520 = vmatprep.subr.mxu0 0.0
    %1521 = vmatpush1.msra.mxu0 0.0
    %1522 = vmatprep.subr.mxu0 0.0
    %1523 = vmatpush1.msra.mxu0 0.0
    %1524 = vmatprep.subr.mxu0 0.0
    %1525 = vmatpush1.msra.mxu0 0.0
    %1526 = vmatprep.subr.mxu0 0.0
    %1527 = vmatpush1.msra.mxu0 0.0
    %1528 = vmatprep.subr.mxu0 0.0
    %1529 = vmatpush1.msra.mxu0 0.0
    %1530 = vmatprep.subr.mxu0 0.0
    %1531 = vmatpush1.msra.mxu0 0.0
    %1532 = vmatprep.subr.mxu0 0.0
    %1533 = vmatpush1.msra.mxu0 0.0
    %1534 = vmatprep.subr.mxu0 0.0
    %1535 = vmatpush1.msra.mxu0 0.0
    %1536 = vmatprep.subr.mxu0 0.0
    %1537 = vmatpush1.msra.mxu0 0.0
    %1538 = vmatprep.subr.mxu0 0.0
    %1539 = vmatpush1.msra.mxu0 0.0
    %1540 = vmatprep.subr.mxu0 0.0
    %1541 = vmatpush1.msra.mxu0 0.0
    %1542 = vmatprep.subr.mxu0 0.0
    %1543 = vmatpush1.msra.mxu0 0.0
    %1544 = vmatprep.subr.mxu0 0.0
    %1545 = vmatpush1.msra.mxu0 0.0
    %1546 = vmatprep.subr.mxu0 0.0
    %1547 = vmatpush1.msra.mxu0 0.0
    %1548 = vmatprep.subr.mxu0 0.0
    %1549 = vmatpush1.msra.mxu0 0.0
    %1550 = vmatprep.subr.mxu0 0.0
    %1551 = vmatpush1.msra.mxu0 0.0
    %1552 = vmatprep.subr.mxu0 0.0
    %1553 = vmatpush1.msra.mxu0 0.0
    %1554 = vmatprep.mubr.f32.mxu0 0.0
    %1555 = vmatmul.mubr.f32.gmra.mrb[0].mxu0 %v1478
    %v1556 = vpop.f32.mrb[0].mxu0
    %v1557 = vadd.f32 0.0, %v1556
    %v1558 = vpop.f32.mrb[0].mxu0
    %1559 = vmatprep.mubr.f32.mxu0 0.0
    %1560 = vmatmul.mubr.f32.gmra.mrb[0].mxu0 %v1480
    %v1561 = vpop.f32.mrb[0].mxu0
    %v1562 = vadd.f32 0.0, %v1561
    %v1563 = vpop.f32.mrb[0].mxu0
    %1564 = vmatprep.mubr.f32.mxu0 0.0
    %1565 = vmatmul.mubr.f32.gmra.mrb[0].mxu0 %v1482
    %v1566 = vpop.f32.mrb[0].mxu0
    %v1567 = vadd.f32 0.0, %v1566
    %v1568 = vpop.f32.mrb[0].mxu0
    %1569 = vmatprep.mubr.f32.mxu0 0.0
    %1570 = vmatmul.mubr.f32.gmra.mrb[0].mxu0 %v1484
    %v1571 = vpop.f32.mrb[0].mxu0
    %v1572 = vadd.f32 0.0, %v1571
    %v1573 = vpop.f32.mrb[0].mxu0
    %1574 = vmatprep.mubr.f32.mxu0 0.0
    %1575 = vmatmul.mubr.f32.gmra.mrb[0].mxu0 %v1486
    %v1576 = vpop.f32.mrb[0].mxu0
    %v1577 = vadd.f32 0.0, %v1576
    %v1578 = vpop.f32.mrb[0].mxu0
    %1579 = vmatprep.mubr.f32.mxu0 0.0
    %1580 = vmatmul.mubr.f32.gmra.mrb[0].mxu0 %v1488
    %v1581 = vpop.f32.mrb[0].mxu0
    %v1582 = vadd.f32 0.0, %v1581
    %v1583 = vpop.f32.mrb[0].mxu0
    %1584 = vdwg.mxu0
    %s1585 = scalar_lea.vmem %s14, 48
    %1586 = vst.msk [vmem:[%s1585] sm:$0xff] %vm144, %v1557
    %1587 = vst.msk [vmem:[%s1585 + $0x8] sm:$0xff] %vm144, %v1562
    %1588 = vst.msk [vmem:[%s1585 + $0x10] sm:$0xff] %vm144, %v1567
    %1589 = vst.msk [vmem:[%s1585 + $0x18] sm:$0xff] %vm144, %v1572
    %1590 = vst.msk [vmem:[%s1585 + $0x20] sm:$0xff] %vm144, %v1577
    %1591 = vst.msk [vmem:[%s1585 + $0x28] sm:$0xff] %vm144, %v1582
    // Predicated region
    $region50: #{tpu_custom_call.1} parent=1 // pred_check
      _
    $region51: #{tpu_custom_call.1} parent=1 // pred_check_branch
      %1593 = sbr.rel (0) target = $region53
    $region52: #{tpu_custom_call.1} parent=1 // pred_region
      %s1595 = ssub.s32 16, 16
      %1596 = vsyncadd [#allocation4], %s1595
      %s1598 = sshll.u32 [#allocation3], 4
      %s1599 = int_to_ptr.vmem [resolvable:$true] %s1598
      %1601 = dma.vmem_to_hbm [thread:$0]  %s1599, 16, %s12, [#allocation4]
    $region53: #{tpu_custom_call.1} parent=1 // pred_fallthru
      _
    // Predicated region
    $region54: #{tpu_custom_call.1} parent=1 // pred_check
      _
    $region55: #{tpu_custom_call.1} parent=1 // pred_check_branch
      %1603 = sbr.rel (0) target = $region57
    $region56: #{tpu_custom_call.1} parent=1 // pred_region
      %s1605 = ssub.s32 16, 16
      %1606 = vsyncadd [#allocation6], %s1605
      %s1608 = sshll.u32 [#allocation5], 4
      %s1609 = int_to_ptr.vmem [resolvable:$true] %s1608
      %1611 = dma.vmem_to_hbm [thread:$0]  %s1609, 16, %s13, [#allocation6]
    $region57: #{tpu_custom_call.1} parent=1 // pred_fallthru
      _
    // Predicated region
    $region58: #{tpu_custom_call.1} parent=1 // pred_check
      _
    $region59: #{tpu_custom_call.1} parent=1 // pred_check_branch
      %1613 = sbr.rel (0) target = $region61
    $region60: #{tpu_custom_call.1} parent=1 // pred_region
      _
    $region61: #{tpu_custom_call.1} parent=1 // pred_fallthru
      _
    // Predicated region
    $region62: #{tpu_custom_call.1} parent=1 // pred_check
      _
    $region63: #{tpu_custom_call.1} parent=1 // pred_check_branch
      %1615 = sbr.rel (0) target = $region65
    $region64: #{tpu_custom_call.1} parent=1 // pred_region
      %1616 = dma.done [#allocation4], 16
    $region65: #{tpu_custom_call.1} parent=1 // pred_fallthru
      _
    // Predicated region
    $region66: #{tpu_custom_call.1} parent=1 // pred_check
      _
    $region67: #{tpu_custom_call.1} parent=1 // pred_check_branch
      %1618 = sbr.rel (0) target = $region69
    $region68: #{tpu_custom_call.1} parent=1 // pred_region
      %1619 = dma.done [#allocation6], 16
    $region69: #{tpu_custom_call.1} parent=1 // pred_fallthru
      _
    // Predicated region
    $region70: #{tpu_custom_call.1} parent=1 // pred_check
      _
    $region71: #{tpu_custom_call.1} parent=1 // pred_check_branch
      %1621 = sbr.rel (0) target = $region73
    $region72: #{tpu_custom_call.1} parent=1 // pred_region
      _
    $region73: #{tpu_custom_call.1} parent=1 // pred_fallthru
      _
    %1622 = vsyncpa [#allocation4], 1
    %1623 = vsyncpa [#allocation6], 1

</llo_original>
